<compile_context>
chip_gen: v5e
topology: v5e:2x2
jax: 0.10.0
libtpu: 0.0.40
codegen_flags: <defaults>
</compile_context>

<pallas_src>
import math
from functools import partial

import jax
import jax.numpy as jnp
from jax.experimental import pallas as pl
from jax.experimental.pallas import tpu as pltpu

LN_EPS = 1e-5  # PyTorch LayerNorm default


# ----------------------------- in-kernel helpers -----------------------------

def _layernorm(x, g, b):
    mu = jnp.mean(x, axis=-1, keepdims=True)
    var = jnp.mean((x - mu) ** 2, axis=-1, keepdims=True)
    return (x - mu) * jax.lax.rsqrt(var + LN_EPS) * g + b


def _softmax(x):
    m = jnp.max(x, axis=-1, keepdims=True)
    e = jnp.exp(x - m)
    # approximate reciprocal runs on the EUP slot -> effectively free
    return e * pl.reciprocal(jnp.sum(e, axis=-1, keepdims=True), approx=True)


def _vmem_limit_bytes():
    """Per-generation VMEM budget (e.g. ~102 MiB on 128 MiB chips, ~51 MiB on v7x)."""
    try:
        cap = pltpu.get_tpu_info().vmem_capacity_bytes
    except Exception:
        cap = 64 * 1024 * 1024
    return int(cap * 0.8)


# -------------------------- patch-embedding kernel ---------------------------

def _linear_kernel(x_ref, w_ref, b_ref, o_ref):
    o_ref[...] = (
        jnp.dot(x_ref[...].astype(jnp.bfloat16), w_ref[...],
                preferred_element_type=jnp.float32)
        + b_ref[...]
    )


def linear_pallas(x, w, b, tm=512):
    """x: (M, K) f32, w: (K, N) bf16, b: (1, N) f32 -> (M, N) f32, tiled over M."""
    M, K = x.shape
    N = w.shape[1]
    tm = min(tm, M)                      # small problems: one full-M block
    return pl.pallas_call(
        _linear_kernel,
        grid=(pl.cdiv(M, tm),),          # ragged tail handled by block masking
        in_specs=[pl.BlockSpec((tm, K), lambda i: (i, 0)),
                  pl.BlockSpec((K, N), lambda i: (0, 0)),
                  pl.BlockSpec((1, N), lambda i: (0, 0))],
        out_specs=pl.BlockSpec((tm, N), lambda i: (i, 0)),
        out_shape=jax.ShapeDtypeStruct((M, N), jnp.float32),
        compiler_params=pltpu.CompilerParams(
            dimension_semantics=("parallel",)),
    )(x, w, b)


# ----------------------- fused encoder stack + MLP head ----------------------

def _vit_stack_kernel(nheads, b_local, seqlen,
                      x_hbm,
                      wqkv_ref, bqkv_ref, wo_ref, bo_ref,
                      ln1g_ref, ln1b_ref, w1_ref, b1_ref, w2_ref, b2_ref,
                      ln2g_ref, ln2b_ref,
                      hg_ref, hb_ref, hw_ref, hbias_ref,
                      logits_ref, res_ref, cat_ref):
    g = pl.program_id(0)                 # core / batch split index
    l = pl.program_id(1)                 # layer index
    nlayers = pl.num_programs(1)

    n_local, D = res_ref.shape           # n_local = b_local * seqlen
    dh = D // nheads
    scale = 1.0 / math.sqrt(dh)

    # Layer 0: DMA this split's rows of the embedded sequence from HBM into the
    # VMEM-resident residual stream; it stays in VMEM for the entire stack.
    @pl.when(l == 0)
    def _():
        pltpu.sync_copy(x_hbm.at[pl.ds(g * n_local, n_local), :], res_ref)

    x = res_ref[...]                     # (n_local, D) f32, batch-major rows

    # Fused QKV projection over the packed rows: one (N,D)@(D,3D) MXU call.
    xb = x.astype(jnp.bfloat16)
    qkv = jnp.dot(xb, wqkv_ref[...],
                  preferred_element_type=jnp.float32) + bqkv_ref[...]
    qkvb = qkv.astype(jnp.bfloat16)      # cast once, sliced per head below

    # Per-image, per-head attention (no cross-image mask, no (B*S)^2 scores).
    # TODO(synk): for production nheads (12-16) / large B, switch the unrolled
    # Python loops to lax.fori_loop over heads (pl.ds slicing) to bound the
    # trace size and vreg live ranges.
    for b in range(b_local):
        rs = slice(b * seqlen, (b + 1) * seqlen)
        for h in range(nheads):
            qc = slice(h * dh, (h + 1) * dh)
            kc = slice(D + h * dh, D + (h + 1) * dh)
            vc = slice(2 * D + h * dh, 2 * D + (h + 1) * dh)
            qh = qkvb[rs, qc]                                   # (S, dh) bf16
            kh = qkvb[rs, kc]
            vh = qkvb[rs, vc]
            s = jnp.dot(qh, kh.T, preferred_element_type=jnp.float32) * scale
            p = _softmax(s).astype(jnp.bfloat16)                # (S, S)
            cat_ref[rs, qc] = jnp.dot(
                p, vh, preferred_element_type=jnp.float32).astype(jnp.bfloat16)

    # Single output projection over the packed rows.
    attn = jnp.dot(cat_ref[...], wo_ref[...],
                   preferred_element_type=jnp.float32) + bo_ref[...]

    # Post-norm encoder layer (PyTorch TransformerEncoderLayer default:
    # norm_first=False, activation=relu, dropout=identity in eval).
    y = _layernorm(x + attn, ln1g_ref[...], ln1b_ref[...])

    h1 = jnp.dot(y.astype(jnp.bfloat16), w1_ref[...],
                 preferred_element_type=jnp.float32) + b1_ref[...]
    h1 = jnp.maximum(h1, 0.0).astype(jnp.bfloat16)
    h2 = jnp.dot(h1, w2_ref[...],
                 preferred_element_type=jnp.float32) + b2_ref[...]

    out = _layernorm(y + h2, ln2g_ref[...], ln2b_ref[...])
    res_ref[...] = out

    # Fused MLP head at the last layer: with batch-major packing, image b's
    # cls token is row b*seqlen.
    @pl.when(l == nlayers - 1)
    def _():
        for b in range(b_local):
            cls = _layernorm(out[b * seqlen:b * seqlen + 1, :],
                             hg_ref[...], hb_ref[...])           # (1, D)
            logits_ref[b:b + 1, :] = (
                jnp.dot(cls.astype(jnp.bfloat16), hw_ref[...],
                        preferred_element_type=jnp.float32) + hbias_ref[...])


_LAYER_NAMES = ['wqkv', 'bqkv', 'wo', 'bo', 'ln1g', 'ln1b',
                'w1', 'b1', 'w2', 'b2', 'ln2g', 'ln2b']


def vit_encoder_head_pallas(xseq, layers, head, nheads, core_splits=1):
    """xseq: (B, S, D) f32 -> logits (B, num_classes) f32, one pallas_call."""
    B, S, D = xseq.shape
    L = layers['wqkv'].shape[0]
    C = head['w'].shape[1]

    # Batch split across TensorCores (2 on v7x; 1 on v5e/v6e).  Falls back to 1
    # if it does not divide the batch; correct (just serial) on 1-TC chips.
    G = core_splits if (core_splits > 0 and B % core_splits == 0) else 1
    b_local = B // G
    n_local = b_local * S

    # Batch-major packing: row index = b*S + s (a free reshape), so each split
    # owns a contiguous row range and each image's cls token is row b*S.
    xflat = xseq.reshape(B * S, D)

    layer_args = [layers[n] for n in _LAYER_NAMES]
    # Layer-stacked weights (L, a, b): layer dim squeezed in-kernel; they change
    # every grid step so the pipeline prefetches layer l+1 while l computes.
    layer_specs = [pl.BlockSpec((None,) + a.shape[1:], lambda g, l: (l, 0, 0))
                   for a in layer_args]
    head_args = [head['lng'], head['lnb'], head['w'], head['b']]
    head_specs = [pl.BlockSpec(a.shape, lambda g, l: (0, 0)) for a in head_args]

    logits = pl.pallas_call(
        partial(_vit_stack_kernel, nheads, b_local, S),
        grid=(G, L),   # batch split (parallel) x layers (sequential, VMEM-resident)
        in_specs=[pl.BlockSpec(memory_space=pl.ANY)]      # packed sequence (HBM)
                 + layer_specs + head_specs,
        out_specs=pl.BlockSpec((None, b_local, C), lambda g, l: (g, 0, 0)),
        out_shape=jax.ShapeDtypeStruct((G, b_local, C), jnp.float32),
        scratch_shapes=[pltpu.VMEM((n_local, D), jnp.float32),    # residual stream
                        pltpu.VMEM((n_local, D), jnp.bfloat16)],  # head concat buf
        compiler_params=pltpu.CompilerParams(
            dimension_semantics=("parallel", "arbitrary"),
            vmem_limit_bytes=_vmem_limit_bytes()),
    )(xflat, *layer_args, *head_args)
    return logits.reshape(B, C)


# ---------------------------------- glue --------------------------------------

def sinusoidal_pe(maxlen, d):
    pos = jnp.arange(maxlen, dtype=jnp.float32)[:, None]
    div = jnp.exp(jnp.arange(0, d, 2, dtype=jnp.float32) * (-math.log(10000.0) / d))
    pe = jnp.zeros((maxlen, d), jnp.float32)
    pe = pe.at[:, 0::2].set(jnp.sin(pos * div))
    pe = pe.at[:, 1::2].set(jnp.cos(pos * div))
    return pe[None]  # (1, maxlen, d) — batch_first


def init_params(key, *, patch_dim, latent_dim, nheads, dim_feedforward,
                num_layers, num_classes, maxlen):
    # Matmul weights stored in bf16 (MXU operands); accumulation is f32 inside
    # the kernels.  Biases / LayerNorm parameters stay f32.
    def dense(k, fan_in, fan_out, wdtype=jnp.bfloat16):
        kw, kb = jax.random.split(k)
        lim = 1.0 / math.sqrt(fan_in)
        w = jax.random.uniform(kw, (fan_in, fan_out), jnp.float32, -lim, lim)
        b = jax.random.uniform(kb, (1, fan_out), jnp.float32, -lim, lim)
        return w.astype(wdtype), b

    keys = jax.random.split(key, 3 + num_layers)
    params = {}
    params['patch_w'], params['patch_b'] = dense(keys[0], patch_dim, latent_dim)
    params['cls_token'] = jax.random.normal(keys[1], (1, 1, latent_dim), jnp.float32)
    params['pe'] = sinusoidal_pe(maxlen, latent_dim)

    per_layer = []
    for li in range(num_layers):
        ks = jax.random.split(keys[2 + li], 4)
        lp = {}
        lp['wqkv'], lp['bqkv'] = dense(ks[0], latent_dim, 3 * latent_dim)  # fused QKV
        lp['wo'], lp['bo'] = dense(ks[1], latent_dim, latent_dim)
        lp['w1'], lp['b1'] = dense(ks[2], latent_dim, dim_feedforward)
        lp['w2'], lp['b2'] = dense(ks[3], dim_feedforward, latent_dim)
        lp['ln1g'] = jnp.ones((1, latent_dim), jnp.float32)
        lp['ln1b'] = jnp.zeros((1, latent_dim), jnp.float32)
        lp['ln2g'] = jnp.ones((1, latent_dim), jnp.float32)
        lp['ln2b'] = jnp.zeros((1, latent_dim), jnp.float32)
        per_layer.append(lp)
    # stack per-layer tensors along a leading L axis so the whole encoder
    # stack runs in one pallas_call with the layer index as a grid axis.
    params['layers'] = {k: jnp.stack([lp[k] for lp in per_layer])
                        for k in per_layer[0]}

    hw, hb = dense(keys[-1], latent_dim, num_classes)
    params['head'] = {
        'lng': jnp.ones((1, latent_dim), jnp.float32),
        'lnb': jnp.zeros((1, latent_dim), jnp.float32),
        'w': hw,
        'b': hb,
    }
    return params


def vit_forward(x, params, *, patch_res, nheads, core_splits=1):
    B, C, H, W = x.shape
    npatches = (H // patch_res) ** 2
    patch_dim = C * patch_res ** 2
    D = params['patch_w'].shape[1]
    S = npatches + 1

    # exact replication of the PyTorch patchification
    xp = jnp.transpose(x, (0, 3, 2, 1)).reshape(B * npatches, patch_dim)

    emb = linear_pallas(xp, params['patch_w'], params['patch_b'])     # (B*N, D)
    emb = emb.reshape(B, npatches, D)

    cls = jnp.broadcast_to(params['cls_token'], (B, 1, D))
    xseq = jnp.concatenate([cls, emb], axis=1)                        # (B, S, D)
    xseq = xseq + params['pe'][:, :S]                                 # dropout = identity

    return vit_encoder_head_pallas(xseq, params['layers'], params['head'],
                                   nheads, core_splits=core_splits)


# ---------------------------------- main ---------------------------------------

if __name__ == "__main__":
    # small configuration consistent with the module
    image_res, patch_res, nchannels = 16, 4, 3
    latent_dim, nheads, dim_feedforward = 32, 4, 64
    num_layers, num_classes = 2, 10
    batch = 2

    npatches = (image_res // patch_res) ** 2
    patch_dim = nchannels * patch_res ** 2

    key = jax.random.PRNGKey(0)
    kx, kp = jax.random.split(key)
    x = jax.random.normal(kx, (batch, nchannels, image_res, image_res), jnp.float32)

    params = init_params(
        kp, patch_dim=patch_dim, latent_dim=latent_dim, nheads=nheads,
        dim_feedforward=dim_feedforward, num_layers=num_layers,
        num_classes=num_classes, maxlen=npatches + 1)

    # core_splits=2 exercises the megacore batch split (uses both TensorCores on
    # v7x; runs serially and correctly on single-TC v5e/v6e).
    fwd = jax.jit(partial(vit_forward, patch_res=patch_res, nheads=nheads,
                          core_splits=2))
    logits = jax.block_until_ready(fwd(x, params))

    assert logits.shape == (batch, num_classes)
    assert bool(jnp.all(jnp.isfinite(logits)))
    print("KERNEL_OK")
</pallas_src>

<mosaic_0001>
module attributes {stable_mosaic.version = 11 : i64} {
  func.func @_linear_kernel(%arg0: i32, %arg1: memref<32x48xf32, #tpu.memory_space<vmem>>, %arg2: memref<48x32xbf16, #tpu.memory_space<vmem>>, %arg3: memref<1x32xf32, #tpu.memory_space<vmem>>, %arg4: memref<32x32xf32, #tpu.memory_space<vmem>>) attributes {dimension_semantics = [#tpu.dimension_semantics<parallel>], iteration_bounds = array<i64: 1>, scalar_prefetch = 0 : i64, scratch_operands = 0 : i64, tpu.core_type = #tpu.core_type<tc>, window_params = [{transform_indices = @transform_0, window_bounds = array<i64: 32, 48>}, {pipeline_mode = #tpu.pipeline_mode<synchronous>, transform_indices = @transform_1, window_bounds = array<i64: 48, 32>}, {pipeline_mode = #tpu.pipeline_mode<synchronous>, transform_indices = @transform_2, window_bounds = array<i64: 1, 32>}, {transform_indices = @transform_3, window_bounds = array<i64: 32, 32>}]} {
    %c0 = arith.constant 0 : index
    %c0_0 = arith.constant 0 : index
    %0 = vector.load %arg1[%c0, %c0_0] : memref<32x48xf32, #tpu.memory_space<vmem>>, vector<32x48xf32>
    %1 = arith.truncf %0 : vector<32x48xf32> to vector<32x48xbf16>
    %c0_1 = arith.constant 0 : index
    %c0_2 = arith.constant 0 : index
    %2 = vector.load %arg2[%c0_1, %c0_2] : memref<48x32xbf16, #tpu.memory_space<vmem>>, vector<48x32xbf16>
    %cst = arith.constant dense<0.000000e+00> : vector<32x32xf32>
    %3 = tpu.matmul %1, %2, %cst {dimension_numbers = #tpu.dot_dimension_numbers<[1], [0], [0], [1], [0, 0, 1, 1], [], []>} : vector<32x48xbf16>, vector<48x32xbf16>, vector<32x32xf32> -> vector<32x32xf32>
    %c0_3 = arith.constant 0 : index
    %c0_4 = arith.constant 0 : index
    %4 = vector.load %arg3[%c0_3, %c0_4] : memref<1x32xf32, #tpu.memory_space<vmem>>, vector<1x32xf32>
    %5 = vector.broadcast %4 : vector<1x32xf32> to vector<32x32xf32>
    %6 = arith.addf %3, %5 : vector<32x32xf32>
    %c0_5 = arith.constant 0 : index
    %c0_6 = arith.constant 0 : index
    %7 = vector.load %arg4[%c0_5, %c0_6] : memref<32x32xf32, #tpu.memory_space<vmem>>, vector<32x32xf32>
    tpu.vector_store %arg4[%c0_5, %c0_6], %6 {strides = array<i32>} : memref<32x32xf32, #tpu.memory_space<vmem>>, vector<32x32xf32>,
    return
  }
  func.func @transform_0(%arg0: i32) -> (i32, i32) {
    %c0_i32 = arith.constant 0 : i32
    %c0_i32_0 = arith.constant 0 : i32
    return %arg0, %c0_i32 : i32, i32
  }
  func.func @transform_1(%arg0: i32) -> (i32, i32) {
    %c0_i32 = arith.constant 0 : i32
    %c0_i32_0 = arith.constant 0 : i32
    %c0_i32_1 = arith.constant 0 : i32
    return %c0_i32, %c0_i32_0 : i32, i32
  }
  func.func @transform_2(%arg0: i32) -> (i32, i32) {
    %c0_i32 = arith.constant 0 : i32
    %c0_i32_0 = arith.constant 0 : i32
    %c0_i32_1 = arith.constant 0 : i32
    return %c0_i32, %c0_i32_0 : i32, i32
  }
  func.func @transform_3(%arg0: i32) -> (i32, i32) {
    %c0_i32 = arith.constant 0 : i32
    %c0_i32_0 = arith.constant 0 : i32
    return %arg0, %c0_i32 : i32, i32
  }
}

module attributes {stable_mosaic.version = 11 : i64} {
  func.func @_vit_stack_kernel(%arg0: i32, %arg1: i32, %arg2: memref<34x32xf32, #tpu.memory_space<any>>, %arg3: memref<1x32x96xbf16, #tpu.memory_space<vmem>>, %arg4: memref<1x1x96xf32, #tpu.memory_space<vmem>>, %arg5: memref<1x32x32xbf16, #tpu.memory_space<vmem>>, %arg6: memref<1x1x32xf32, #tpu.memory_space<vmem>>, %arg7: memref<1x1x32xf32, #tpu.memory_space<vmem>>, %arg8: memref<1x1x32xf32, #tpu.memory_space<vmem>>, %arg9: memref<1x32x64xbf16, #tpu.memory_space<vmem>>, %arg10: memref<1x1x64xf32, #tpu.memory_space<vmem>>, %arg11: memref<1x64x32xbf16, #tpu.memory_space<vmem>>, %arg12: memref<1x1x32xf32, #tpu.memory_space<vmem>>, %arg13: memref<1x1x32xf32, #tpu.memory_space<vmem>>, %arg14: memref<1x1x32xf32, #tpu.memory_space<vmem>>, %arg15: memref<1x32xf32, #tpu.memory_space<vmem>>, %arg16: memref<1x32xf32, #tpu.memory_space<vmem>>, %arg17: memref<32x10xbf16, #tpu.memory_space<vmem>>, %arg18: memref<1x10xf32, #tpu.memory_space<vmem>>, %arg19: memref<1x1x10xf32, #tpu.memory_space<vmem>>, %arg20: memref<17x32xf32, #tpu.memory_space<vmem>>, %arg21: memref<17x32xbf16, #tpu.memory_space<vmem>>) attributes {dimension_semantics = [#tpu.dimension_semantics<parallel>, #tpu.dimension_semantics<arbitrary>], iteration_bounds = array<i64: 2, 2>, scalar_prefetch = 0 : i64, scratch_operands = 2 : i64, tpu.core_type = #tpu.core_type<tc>, window_params = [{}, {transform_indices = @transform_1, window_bounds = array<i64: 1, 32, 96>}, {transform_indices = @transform_2, window_bounds = array<i64: 1, 1, 96>}, {transform_indices = @transform_3, window_bounds = array<i64: 1, 32, 32>}, {transform_indices = @transform_4, window_bounds = array<i64: 1, 1, 32>}, {transform_indices = @transform_5, window_bounds = array<i64: 1, 1, 32>}, {transform_indices = @transform_6, window_bounds = array<i64: 1, 1, 32>}, {transform_indices = @transform_7, window_bounds = array<i64: 1, 32, 64>}, {transform_indices = @transform_8, window_bounds = array<i64: 1, 1, 64>}, {transform_indices = @transform_9, window_bounds = array<i64: 1, 64, 32>}, {transform_indices = @transform_10, window_bounds = array<i64: 1, 1, 32>}, {transform_indices = @transform_11, window_bounds = array<i64: 1, 1, 32>}, {transform_indices = @transform_12, window_bounds = array<i64: 1, 1, 32>}, {pipeline_mode = #tpu.pipeline_mode<synchronous>, transform_indices = @transform_13, window_bounds = array<i64: 1, 32>}, {pipeline_mode = #tpu.pipeline_mode<synchronous>, transform_indices = @transform_14, window_bounds = array<i64: 1, 32>}, {pipeline_mode = #tpu.pipeline_mode<synchronous>, transform_indices = @transform_15, window_bounds = array<i64: 32, 10>}, {pipeline_mode = #tpu.pipeline_mode<synchronous>, transform_indices = @transform_16, window_bounds = array<i64: 1, 10>}, {transform_indices = @transform_17, window_bounds = array<i64: 1, 1, 10>}]} {
    %c0_i32 = arith.constant 0 : i32
    %0 = arith.cmpi eq, %arg1, %c0_i32 : i32
    %1 = arith.extui %0 : i1 to i32
    %c0_i32_0 = arith.constant 0 : i32
    %2 = arith.cmpi ne, %1, %c0_i32_0 : i32
    scf.if %2 {
      %c17_i32 = arith.constant 17 : i32
      %181 = arith.muli %arg0, %c17_i32 : i32
      "tpu.region"() ({
        %182 = tpu.sem_alloc : memref<!tpu.dma_semaphore, #tpu.memory_space<semaphore_mem>>
        %c0_i32_82 = arith.constant 0 : i32
        %183 = tpu.memref_slice %arg2[%181, %c0_i32_82] : memref<34x32xf32, #tpu.memory_space<any>> -> memref<17x32xf32, #tpu.memory_space<any>>
        tpu.enqueue_dma source(%183 : memref<17x32xf32, #tpu.memory_space<any>>) target(%arg20 : memref<17x32xf32, #tpu.memory_space<vmem>>) target_semaphore(%182 : memref<!tpu.dma_semaphore, #tpu.memory_space<semaphore_mem>>)
        %c0_i32_83 = arith.constant 0 : i32
        %184 = tpu.memref_slice %arg2[%181, %c0_i32_83] : memref<34x32xf32, #tpu.memory_space<any>> -> memref<17x32xf32, #tpu.memory_space<any>>
        tpu.wait_dma2 semaphore(%182 : memref<!tpu.dma_semaphore, #tpu.memory_space<semaphore_mem>>) src(%184 : memref<17x32xf32, #tpu.memory_space<any>>) dst(%arg20 : memref<17x32xf32, #tpu.memory_space<vmem>>)
        tpu.yield
      }) : () -> ()
    } else {
    }
    %c0 = arith.constant 0 : index
    %c0_1 = arith.constant 0 : index
    %3 = vector.load %arg20[%c0, %c0_1] : memref<17x32xf32, #tpu.memory_space<vmem>>, vector<17x32xf32>
    %4 = arith.truncf %3 : vector<17x32xf32> to vector<17x32xbf16>
    %c0_2 = arith.constant 0 : index
    %c0_3 = arith.constant 0 : index
    %c0_4 = arith.constant 0 : index
    %5 = vector.load %arg3[%c0_2, %c0_3, %c0_4] : memref<1x32x96xbf16, #tpu.memory_space<vmem>>, vector<1x32x96xbf16>
    %6 = vector.shape_cast %5 : vector<1x32x96xbf16> to vector<32x96xbf16>
    %cst = arith.constant dense<0.000000e+00> : vector<17x96xf32>
    %7 = tpu.matmul %4, %6, %cst {dimension_numbers = #tpu.dot_dimension_numbers<[1], [0], [0], [1], [0, 0, 1, 1], [], []>} : vector<17x32xbf16>, vector<32x96xbf16>, vector<17x96xf32> -> vector<17x96xf32>
    %c0_5 = arith.constant 0 : index
    %c0_6 = arith.constant 0 : index
    %c0_7 = arith.constant 0 : index
    %8 = vector.load %arg4[%c0_5, %c0_6, %c0_7] : memref<1x1x96xf32, #tpu.memory_space<vmem>>, vector<1x1x96xf32>
    %9 = vector.shape_cast %8 : vector<1x1x96xf32> to vector<1x96xf32>
    %10 = vector.broadcast %9 : vector<1x96xf32> to vector<17x96xf32>
    %11 = arith.addf %7, %10 : vector<17x96xf32>
    %12 = arith.truncf %11 : vector<17x96xf32> to vector<17x96xbf16>
    %13 = vector.extract_strided_slice %12 {offsets = [0, 0], sizes = [17, 8], strides = [1, 1]} : vector<17x96xbf16> to vector<17x8xbf16>
    %14 = vector.extract_strided_slice %12 {offsets = [0, 32], sizes = [17, 8], strides = [1, 1]} : vector<17x96xbf16> to vector<17x8xbf16>
    %15 = vector.extract_strided_slice %12 {offsets = [0, 64], sizes = [17, 8], strides = [1, 1]} : vector<17x96xbf16> to vector<17x8xbf16>
    %16 = tpu.transpose %14, [1, 0] : vector<17x8xbf16> -> vector<8x17xbf16>
    %cst_8 = arith.constant dense<0.000000e+00> : vector<17x17xf32>
    %17 = tpu.matmul %13, %16, %cst_8 {dimension_numbers = #tpu.dot_dimension_numbers<[1], [0], [0], [1], [0, 0, 1, 1], [], []>} : vector<17x8xbf16>, vector<8x17xbf16>, vector<17x17xf32> -> vector<17x17xf32>
    %cst_9 = arith.constant 0.353553385 : f32
    %18 = vector.broadcast %cst_9 : f32 to vector<17x17xf32>
    %19 = arith.mulf %17, %18 : vector<17x17xf32>
    %cst_10 = arith.constant dense<0xFF800000> : vector<17xf32>
    %20 = vector.multi_reduction <maximumf>, %19, %cst_10 [1] : vector<17x17xf32> to vector<17xf32>
    %21 = vector.shape_cast %20 : vector<17xf32> to vector<17x1xf32>
    %22 = vector.broadcast %21 : vector<17x1xf32> to vector<17x17xf32>
    %23 = arith.subf %19, %22 : vector<17x17xf32>
    %24 = math.exp %23 : vector<17x17xf32>
    %cst_11 = arith.constant dense<0.000000e+00> : vector<17xf32>
    %25 = vector.multi_reduction <add>, %24, %cst_11 [1] : vector<17x17xf32> to vector<17xf32>
    %26 = vector.shape_cast %25 : vector<17xf32> to vector<17x1xf32>
    %27 = tpu.reciprocal %26 {approx = true} : vector<17x1xf32> -> vector<17x1xf32>
    %28 = vector.broadcast %27 : vector<17x1xf32> to vector<17x17xf32>
    %29 = arith.mulf %24, %28 : vector<17x17xf32>
    %30 = arith.truncf %29 : vector<17x17xf32> to vector<17x17xbf16>
    %cst_12 = arith.constant dense<0.000000e+00> : vector<17x8xf32>
    %31 = tpu.matmul %30, %15, %cst_12 {dimension_numbers = #tpu.dot_dimension_numbers<[1], [0], [0], [1], [0, 0, 1, 1], [], []>} : vector<17x17xbf16>, vector<17x8xbf16>, vector<17x8xf32> -> vector<17x8xf32>
    %32 = arith.truncf %31 : vector<17x8xf32> to vector<17x8xbf16>
    %c0_13 = arith.constant 0 : index
    %c0_14 = arith.constant 0 : index
    %33 = vector.load %arg21[%c0_13, %c0_14] : memref<17x32xbf16, #tpu.memory_space<vmem>>, vector<17x8xbf16>
    tpu.vector_store %arg21[%c0_13, %c0_14], %32 {strides = array<i32>} : memref<17x32xbf16, #tpu.memory_space<vmem>>, vector<17x8xbf16>,
    %34 = vector.extract_strided_slice %12 {offsets = [0, 8], sizes = [17, 8], strides = [1, 1]} : vector<17x96xbf16> to vector<17x8xbf16>
    %35 = vector.extract_strided_slice %12 {offsets = [0, 40], sizes = [17, 8], strides = [1, 1]} : vector<17x96xbf16> to vector<17x8xbf16>
    %36 = vector.extract_strided_slice %12 {offsets = [0, 72], sizes = [17, 8], strides = [1, 1]} : vector<17x96xbf16> to vector<17x8xbf16>
    %37 = tpu.transpose %35, [1, 0] : vector<17x8xbf16> -> vector<8x17xbf16>
    %cst_15 = arith.constant dense<0.000000e+00> : vector<17x17xf32>
    %38 = tpu.matmul %34, %37, %cst_15 {dimension_numbers = #tpu.dot_dimension_numbers<[1], [0], [0], [1], [0, 0, 1, 1], [], []>} : vector<17x8xbf16>, vector<8x17xbf16>, vector<17x17xf32> -> vector<17x17xf32>
    %cst_16 = arith.constant 0.353553385 : f32
    %39 = vector.broadcast %cst_16 : f32 to vector<17x17xf32>
    %40 = arith.mulf %38, %39 : vector<17x17xf32>
    %cst_17 = arith.constant dense<0xFF800000> : vector<17xf32>
    %41 = vector.multi_reduction <maximumf>, %40, %cst_17 [1] : vector<17x17xf32> to vector<17xf32>
    %42 = vector.shape_cast %41 : vector<17xf32> to vector<17x1xf32>
    %43 = vector.broadcast %42 : vector<17x1xf32> to vector<17x17xf32>
    %44 = arith.subf %40, %43 : vector<17x17xf32>
    %45 = math.exp %44 : vector<17x17xf32>
    %cst_18 = arith.constant dense<0.000000e+00> : vector<17xf32>
    %46 = vector.multi_reduction <add>, %45, %cst_18 [1] : vector<17x17xf32> to vector<17xf32>
    %47 = vector.shape_cast %46 : vector<17xf32> to vector<17x1xf32>
    %48 = tpu.reciprocal %47 {approx = true} : vector<17x1xf32> -> vector<17x1xf32>
    %49 = vector.broadcast %48 : vector<17x1xf32> to vector<17x17xf32>
    %50 = arith.mulf %45, %49 : vector<17x17xf32>
    %51 = arith.truncf %50 : vector<17x17xf32> to vector<17x17xbf16>
    %cst_19 = arith.constant dense<0.000000e+00> : vector<17x8xf32>
    %52 = tpu.matmul %51, %36, %cst_19 {dimension_numbers = #tpu.dot_dimension_numbers<[1], [0], [0], [1], [0, 0, 1, 1], [], []>} : vector<17x17xbf16>, vector<17x8xbf16>, vector<17x8xf32> -> vector<17x8xf32>
    %53 = arith.truncf %52 : vector<17x8xf32> to vector<17x8xbf16>
    %c0_20 = arith.constant 0 : index
    %c8 = arith.constant 8 : index
    %54 = vector.load %arg21[%c0_20, %c8] : memref<17x32xbf16, #tpu.memory_space<vmem>>, vector<17x8xbf16>
    tpu.vector_store %arg21[%c0_20, %c8], %53 {strides = array<i32>} : memref<17x32xbf16, #tpu.memory_space<vmem>>, vector<17x8xbf16>,
    %55 = vector.extract_strided_slice %12 {offsets = [0, 16], sizes = [17, 8], strides = [1, 1]} : vector<17x96xbf16> to vector<17x8xbf16>
    %56 = vector.extract_strided_slice %12 {offsets = [0, 48], sizes = [17, 8], strides = [1, 1]} : vector<17x96xbf16> to vector<17x8xbf16>
    %57 = vector.extract_strided_slice %12 {offsets = [0, 80], sizes = [17, 8], strides = [1, 1]} : vector<17x96xbf16> to vector<17x8xbf16>
    %58 = tpu.transpose %56, [1, 0] : vector<17x8xbf16> -> vector<8x17xbf16>
    %cst_21 = arith.constant dense<0.000000e+00> : vector<17x17xf32>
    %59 = tpu.matmul %55, %58, %cst_21 {dimension_numbers = #tpu.dot_dimension_numbers<[1], [0], [0], [1], [0, 0, 1, 1], [], []>} : vector<17x8xbf16>, vector<8x17xbf16>, vector<17x17xf32> -> vector<17x17xf32>
    %cst_22 = arith.constant 0.353553385 : f32
    %60 = vector.broadcast %cst_22 : f32 to vector<17x17xf32>
    %61 = arith.mulf %59, %60 : vector<17x17xf32>
    %cst_23 = arith.constant dense<0xFF800000> : vector<17xf32>
    %62 = vector.multi_reduction <maximumf>, %61, %cst_23 [1] : vector<17x17xf32> to vector<17xf32>
    %63 = vector.shape_cast %62 : vector<17xf32> to vector<17x1xf32>
    %64 = vector.broadcast %63 : vector<17x1xf32> to vector<17x17xf32>
    %65 = arith.subf %61, %64 : vector<17x17xf32>
    %66 = math.exp %65 : vector<17x17xf32>
    %cst_24 = arith.constant dense<0.000000e+00> : vector<17xf32>
    %67 = vector.multi_reduction <add>, %66, %cst_24 [1] : vector<17x17xf32> to vector<17xf32>
    %68 = vector.shape_cast %67 : vector<17xf32> to vector<17x1xf32>
    %69 = tpu.reciprocal %68 {approx = true} : vector<17x1xf32> -> vector<17x1xf32>
    %70 = vector.broadcast %69 : vector<17x1xf32> to vector<17x17xf32>
    %71 = arith.mulf %66, %70 : vector<17x17xf32>
    %72 = arith.truncf %71 : vector<17x17xf32> to vector<17x17xbf16>
    %cst_25 = arith.constant dense<0.000000e+00> : vector<17x8xf32>
    %73 = tpu.matmul %72, %57, %cst_25 {dimension_numbers = #tpu.dot_dimension_numbers<[1], [0], [0], [1], [0, 0, 1, 1], [], []>} : vector<17x17xbf16>, vector<17x8xbf16>, vector<17x8xf32> -> vector<17x8xf32>
    %74 = arith.truncf %73 : vector<17x8xf32> to vector<17x8xbf16>
    %c0_26 = arith.constant 0 : index
    %c16 = arith.constant 16 : index
    %75 = vector.load %arg21[%c0_26, %c16] : memref<17x32xbf16, #tpu.memory_space<vmem>>, vector<17x8xbf16>
    tpu.vector_store %arg21[%c0_26, %c16], %74 {strides = array<i32>} : memref<17x32xbf16, #tpu.memory_space<vmem>>, vector<17x8xbf16>,
    %76 = vector.extract_strided_slice %12 {offsets = [0, 24], sizes = [17, 8], strides = [1, 1]} : vector<17x96xbf16> to vector<17x8xbf16>
    %77 = vector.extract_strided_slice %12 {offsets = [0, 56], sizes = [17, 8], strides = [1, 1]} : vector<17x96xbf16> to vector<17x8xbf16>
    %78 = vector.extract_strided_slice %12 {offsets = [0, 88], sizes = [17, 8], strides = [1, 1]} : vector<17x96xbf16> to vector<17x8xbf16>
    %79 = tpu.transpose %77, [1, 0] : vector<17x8xbf16> -> vector<8x17xbf16>
    %cst_27 = arith.constant dense<0.000000e+00> : vector<17x17xf32>
    %80 = tpu.matmul %76, %79, %cst_27 {dimension_numbers = #tpu.dot_dimension_numbers<[1], [0], [0], [1], [0, 0, 1, 1], [], []>} : vector<17x8xbf16>, vector<8x17xbf16>, vector<17x17xf32> -> vector<17x17xf32>
    %cst_28 = arith.constant 0.353553385 : f32
    %81 = vector.broadcast %cst_28 : f32 to vector<17x17xf32>
    %82 = arith.mulf %80, %81 : vector<17x17xf32>
    %cst_29 = arith.constant dense<0xFF800000> : vector<17xf32>
    %83 = vector.multi_reduction <maximumf>, %82, %cst_29 [1] : vector<17x17xf32> to vector<17xf32>
    %84 = vector.shape_cast %83 : vector<17xf32> to vector<17x1xf32>
    %85 = vector.broadcast %84 : vector<17x1xf32> to vector<17x17xf32>
    %86 = arith.subf %82, %85 : vector<17x17xf32>
    %87 = math.exp %86 : vector<17x17xf32>
    %cst_30 = arith.constant dense<0.000000e+00> : vector<17xf32>
    %88 = vector.multi_reduction <add>, %87, %cst_30 [1] : vector<17x17xf32> to vector<17xf32>
    %89 = vector.shape_cast %88 : vector<17xf32> to vector<17x1xf32>
    %90 = tpu.reciprocal %89 {approx = true} : vector<17x1xf32> -> vector<17x1xf32>
    %91 = vector.broadcast %90 : vector<17x1xf32> to vector<17x17xf32>
    %92 = arith.mulf %87, %91 : vector<17x17xf32>
    %93 = arith.truncf %92 : vector<17x17xf32> to vector<17x17xbf16>
    %cst_31 = arith.constant dense<0.000000e+00> : vector<17x8xf32>
    %94 = tpu.matmul %93, %78, %cst_31 {dimension_numbers = #tpu.dot_dimension_numbers<[1], [0], [0], [1], [0, 0, 1, 1], [], []>} : vector<17x17xbf16>, vector<17x8xbf16>, vector<17x8xf32> -> vector<17x8xf32>
    %95 = arith.truncf %94 : vector<17x8xf32> to vector<17x8xbf16>
    %c0_32 = arith.constant 0 : index
    %c24 = arith.constant 24 : index
    %96 = vector.load %arg21[%c0_32, %c24] : memref<17x32xbf16, #tpu.memory_space<vmem>>, vector<17x8xbf16>
    tpu.vector_store %arg21[%c0_32, %c24], %95 {strides = array<i32>} : memref<17x32xbf16, #tpu.memory_space<vmem>>, vector<17x8xbf16>,
    %c0_33 = arith.constant 0 : index
    %c0_34 = arith.constant 0 : index
    %97 = vector.load %arg21[%c0_33, %c0_34] : memref<17x32xbf16, #tpu.memory_space<vmem>>, vector<17x32xbf16>
    %c0_35 = arith.constant 0 : index
    %c0_36 = arith.constant 0 : index
    %c0_37 = arith.constant 0 : index
    %98 = vector.load %arg5[%c0_35, %c0_36, %c0_37] : memref<1x32x32xbf16, #tpu.memory_space<vmem>>, vector<1x32x32xbf16>
    %99 = vector.shape_cast %98 : vector<1x32x32xbf16> to vector<32x32xbf16>
    %cst_38 = arith.constant dense<0.000000e+00> : vector<17x32xf32>
    %100 = tpu.matmul %97, %99, %cst_38 {dimension_numbers = #tpu.dot_dimension_numbers<[1], [0], [0], [1], [0, 0, 1, 1], [], []>} : vector<17x32xbf16>, vector<32x32xbf16>, vector<17x32xf32> -> vector<17x32xf32>
    %c0_39 = arith.constant 0 : index
    %c0_40 = arith.constant 0 : index
    %c0_41 = arith.constant 0 : index
    %101 = vector.load %arg6[%c0_39, %c0_40, %c0_41] : memref<1x1x32xf32, #tpu.memory_space<vmem>>, vector<1x1x32xf32>
    %102 = vector.shape_cast %101 : vector<1x1x32xf32> to vector<1x32xf32>
    %103 = vector.broadcast %102 : vector<1x32xf32> to vector<17x32xf32>
    %104 = arith.addf %100, %103 : vector<17x32xf32>
    %105 = arith.addf %3, %104 : vector<17x32xf32>
    %c0_42 = arith.constant 0 : index
    %c0_43 = arith.constant 0 : index
    %c0_44 = arith.constant 0 : index
    %106 = vector.load %arg7[%c0_42, %c0_43, %c0_44] : memref<1x1x32xf32, #tpu.memory_space<vmem>>, vector<1x1x32xf32>
    %107 = vector.shape_cast %106 : vector<1x1x32xf32> to vector<1x32xf32>
    %c0_45 = arith.constant 0 : index
    %c0_46 = arith.constant 0 : index
    %c0_47 = arith.constant 0 : index
    %108 = vector.load %arg8[%c0_45, %c0_46, %c0_47] : memref<1x1x32xf32, #tpu.memory_space<vmem>>, vector<1x1x32xf32>
    %109 = vector.shape_cast %108 : vector<1x1x32xf32> to vector<1x32xf32>
    %cst_48 = arith.constant dense<0.000000e+00> : vector<17xf32>
    %110 = vector.multi_reduction <add>, %105, %cst_48 [1] : vector<17x32xf32> to vector<17xf32>
    %111 = vector.shape_cast %110 : vector<17xf32> to vector<17x1xf32>
    %cst_49 = arith.constant 3.200000e+01 : f32
    %112 = vector.broadcast %cst_49 : f32 to vector<17x1xf32>
    %113 = arith.divf %111, %112 : vector<17x1xf32>
    %114 = vector.broadcast %113 : vector<17x1xf32> to vector<17x32xf32>
    %115 = arith.subf %105, %114 : vector<17x32xf32>
    %116 = arith.mulf %115, %115 : vector<17x32xf32>
    %cst_50 = arith.constant dense<0.000000e+00> : vector<17xf32>
    %117 = vector.multi_reduction <add>, %116, %cst_50 [1] : vector<17x32xf32> to vector<17xf32>
    %118 = vector.shape_cast %117 : vector<17xf32> to vector<17x1xf32>
    %cst_51 = arith.constant 3.200000e+01 : f32
    %119 = vector.broadcast %cst_51 : f32 to vector<17x1xf32>
    %120 = arith.divf %118, %119 : vector<17x1xf32>
    %121 = vector.broadcast %113 : vector<17x1xf32> to vector<17x32xf32>
    %122 = arith.subf %105, %121 : vector<17x32xf32>
    %cst_52 = arith.constant 9.99999974E-6 : f32
    %123 = vector.broadcast %cst_52 : f32 to vector<17x1xf32>
    %124 = arith.addf %120, %123 : vector<17x1xf32>
    %125 = math.rsqrt %124 : vector<17x1xf32>
    %126 = vector.broadcast %125 : vector<17x1xf32> to vector<17x32xf32>
    %127 = arith.mulf %122, %126 : vector<17x32xf32>
    %128 = vector.broadcast %107 : vector<1x32xf32> to vector<17x32xf32>
    %129 = arith.mulf %127, %128 : vector<17x32xf32>
    %130 = vector.broadcast %109 : vector<1x32xf32> to vector<17x32xf32>
    %131 = arith.addf %129, %130 : vector<17x32xf32>
    %132 = arith.truncf %131 : vector<17x32xf32> to vector<17x32xbf16>
    %c0_53 = arith.constant 0 : index
    %c0_54 = arith.constant 0 : index
    %c0_55 = arith.constant 0 : index
    %133 = vector.load %arg9[%c0_53, %c0_54, %c0_55] : memref<1x32x64xbf16, #tpu.memory_space<vmem>>, vector<1x32x64xbf16>
    %134 = vector.shape_cast %133 : vector<1x32x64xbf16> to vector<32x64xbf16>
    %cst_56 = arith.constant dense<0.000000e+00> : vector<17x64xf32>
    %135 = tpu.matmul %132, %134, %cst_56 {dimension_numbers = #tpu.dot_dimension_numbers<[1], [0], [0], [1], [0, 0, 1, 1], [], []>} : vector<17x32xbf16>, vector<32x64xbf16>, vector<17x64xf32> -> vector<17x64xf32>
    %c0_57 = arith.constant 0 : index
    %c0_58 = arith.constant 0 : index
    %c0_59 = arith.constant 0 : index
    %136 = vector.load %arg10[%c0_57, %c0_58, %c0_59] : memref<1x1x64xf32, #tpu.memory_space<vmem>>, vector<1x1x64xf32>
    %137 = vector.shape_cast %136 : vector<1x1x64xf32> to vector<1x64xf32>
    %138 = vector.broadcast %137 : vector<1x64xf32> to vector<17x64xf32>
    %139 = arith.addf %135, %138 : vector<17x64xf32>
    %cst_60 = arith.constant 0.000000e+00 : f32
    %140 = vector.broadcast %cst_60 : f32 to vector<17x64xf32>
    %141 = arith.maximumf %139, %140 : vector<17x64xf32>
    %142 = arith.truncf %141 : vector<17x64xf32> to vector<17x64xbf16>
    %c0_61 = arith.constant 0 : index
    %c0_62 = arith.constant 0 : index
    %c0_63 = arith.constant 0 : index
    %143 = vector.load %arg11[%c0_61, %c0_62, %c0_63] : memref<1x64x32xbf16, #tpu.memory_space<vmem>>, vector<1x64x32xbf16>
    %144 = vector.shape_cast %143 : vector<1x64x32xbf16> to vector<64x32xbf16>
    %cst_64 = arith.constant dense<0.000000e+00> : vector<17x32xf32>
    %145 = tpu.matmul %142, %144, %cst_64 {dimension_numbers = #tpu.dot_dimension_numbers<[1], [0], [0], [1], [0, 0, 1, 1], [], []>} : vector<17x64xbf16>, vector<64x32xbf16>, vector<17x32xf32> -> vector<17x32xf32>
    %c0_65 = arith.constant 0 : index
    %c0_66 = arith.constant 0 : index
    %c0_67 = arith.constant 0 : index
    %146 = vector.load %arg12[%c0_65, %c0_66, %c0_67] : memref<1x1x32xf32, #tpu.memory_space<vmem>>, vector<1x1x32xf32>
    %147 = vector.shape_cast %146 : vector<1x1x32xf32> to vector<1x32xf32>
    %148 = vector.broadcast %147 : vector<1x32xf32> to vector<17x32xf32>
    %149 = arith.addf %145, %148 : vector<17x32xf32>
    %150 = arith.addf %131, %149 : vector<17x32xf32>
    %c0_68 = arith.constant 0 : index
    %c0_69 = arith.constant 0 : index
    %c0_70 = arith.constant 0 : index
    %151 = vector.load %arg13[%c0_68, %c0_69, %c0_70] : memref<1x1x32xf32, #tpu.memory_space<vmem>>, vector<1x1x32xf32>
    %152 = vector.shape_cast %151 : vector<1x1x32xf32> to vector<1x32xf32>
    %c0_71 = arith.constant 0 : index
    %c0_72 = arith.constant 0 : index
    %c0_73 = arith.constant 0 : index
    %153 = vector.load %arg14[%c0_71, %c0_72, %c0_73] : memref<1x1x32xf32, #tpu.memory_space<vmem>>, vector<1x1x32xf32>
    %154 = vector.shape_cast %153 : vector<1x1x32xf32> to vector<1x32xf32>
    %cst_74 = arith.constant dense<0.000000e+00> : vector<17xf32>
    %155 = vector.multi_reduction <add>, %150, %cst_74 [1] : vector<17x32xf32> to vector<17xf32>
    %156 = vector.shape_cast %155 : vector<17xf32> to vector<17x1xf32>
    %cst_75 = arith.constant 3.200000e+01 : f32
    %157 = vector.broadcast %cst_75 : f32 to vector<17x1xf32>
    %158 = arith.divf %156, %157 : vector<17x1xf32>
    %159 = vector.broadcast %158 : vector<17x1xf32> to vector<17x32xf32>
    %160 = arith.subf %150, %159 : vector<17x32xf32>
    %161 = arith.mulf %160, %160 : vector<17x32xf32>
    %cst_76 = arith.constant dense<0.000000e+00> : vector<17xf32>
    %162 = vector.multi_reduction <add>, %161, %cst_76 [1] : vector<17x32xf32> to vector<17xf32>
    %163 = vector.shape_cast %162 : vector<17xf32> to vector<17x1xf32>
    %cst_77 = arith.constant 3.200000e+01 : f32
    %164 = vector.broadcast %cst_77 : f32 to vector<17x1xf32>
    %165 = arith.divf %163, %164 : vector<17x1xf32>
    %166 = vector.broadcast %158 : vector<17x1xf32> to vector<17x32xf32>
    %167 = arith.subf %150, %166 : vector<17x32xf32>
    %cst_78 = arith.constant 9.99999974E-6 : f32
    %168 = vector.broadcast %cst_78 : f32 to vector<17x1xf32>
    %169 = arith.addf %165, %168 : vector<17x1xf32>
    %170 = math.rsqrt %169 : vector<17x1xf32>
    %171 = vector.broadcast %170 : vector<17x1xf32> to vector<17x32xf32>
    %172 = arith.mulf %167, %171 : vector<17x32xf32>
    %173 = vector.broadcast %152 : vector<1x32xf32> to vector<17x32xf32>
    %174 = arith.mulf %172, %173 : vector<17x32xf32>
    %175 = vector.broadcast %154 : vector<1x32xf32> to vector<17x32xf32>
    %176 = arith.addf %174, %175 : vector<17x32xf32>
    %c0_79 = arith.constant 0 : index
    %c0_80 = arith.constant 0 : index
    %177 = vector.load %arg20[%c0_79, %c0_80] : memref<17x32xf32, #tpu.memory_space<vmem>>, vector<17x32xf32>
    tpu.vector_store %arg20[%c0_79, %c0_80], %176 {strides = array<i32>} : memref<17x32xf32, #tpu.memory_space<vmem>>, vector<17x32xf32>,
    %c1_i32 = arith.constant 1 : i32
    %178 = arith.cmpi eq, %arg1, %c1_i32 : i32
    %179 = arith.extui %178 : i1 to i32
    %c0_i32_81 = arith.constant 0 : i32
    %180 = arith.cmpi ne, %179, %c0_i32_81 : i32
    scf.if %180 {
      %181 = vector.extract_strided_slice %176 {offsets = [0, 0], sizes = [1, 32], strides = [1, 1]} : vector<17x32xf32> to vector<1x32xf32>
      %c0_82 = arith.constant 0 : index
      %c0_83 = arith.constant 0 : index
      %182 = vector.load %arg15[%c0_82, %c0_83] : memref<1x32xf32, #tpu.memory_space<vmem>>, vector<1x32xf32>
      %c0_84 = arith.constant 0 : index
      %c0_85 = arith.constant 0 : index
      %183 = vector.load %arg16[%c0_84, %c0_85] : memref<1x32xf32, #tpu.memory_space<vmem>>, vector<1x32xf32>
      %cst_86 = arith.constant dense<0.000000e+00> : vector<1xf32>
      %184 = vector.multi_reduction <add>, %181, %cst_86 [1] : vector<1x32xf32> to vector<1xf32>
      %185 = vector.shape_cast %184 : vector<1xf32> to vector<1x1xf32>
      %cst_87 = arith.constant 3.200000e+01 : f32
      %186 = vector.broadcast %cst_87 : f32 to vector<1x1xf32>
      %187 = arith.divf %185, %186 : vector<1x1xf32>
      %188 = vector.broadcast %187 : vector<1x1xf32> to vector<1x32xf32>
      %189 = arith.subf %181, %188 : vector<1x32xf32>
      %190 = arith.mulf %189, %189 : vector<1x32xf32>
      %cst_88 = arith.constant dense<0.000000e+00> : vector<1xf32>
      %191 = vector.multi_reduction <add>, %190, %cst_88 [1] : vector<1x32xf32> to vector<1xf32>
      %192 = vector.shape_cast %191 : vector<1xf32> to vector<1x1xf32>
      %cst_89 = arith.constant 3.200000e+01 : f32
      %193 = vector.broadcast %cst_89 : f32 to vector<1x1xf32>
      %194 = arith.divf %192, %193 : vector<1x1xf32>
      %195 = vector.broadcast %187 : vector<1x1xf32> to vector<1x32xf32>
      %196 = arith.subf %181, %195 : vector<1x32xf32>
      %cst_90 = arith.constant 9.99999974E-6 : f32
      %197 = vector.broadcast %cst_90 : f32 to vector<1x1xf32>
      %198 = arith.addf %194, %197 : vector<1x1xf32>
      %199 = math.rsqrt %198 : vector<1x1xf32>
      %200 = vector.broadcast %199 : vector<1x1xf32> to vector<1x32xf32>
      %201 = arith.mulf %196, %200 : vector<1x32xf32>
      %202 = arith.mulf %201, %182 : vector<1x32xf32>
      %203 = arith.addf %202, %183 : vector<1x32xf32>
      %204 = arith.truncf %203 : vector<1x32xf32> to vector<1x32xbf16>
      %c0_91 = arith.constant 0 : index
      %c0_92 = arith.constant 0 : index
      %205 = vector.load %arg17[%c0_91, %c0_92] : memref<32x10xbf16, #tpu.memory_space<vmem>>, vector<32x10xbf16>
      %cst_93 = arith.constant dense<0.000000e+00> : vector<1x10xf32>
      %206 = tpu.matmul %204, %205, %cst_93 {dimension_numbers = #tpu.dot_dimension_numbers<[1], [0], [0], [1], [0, 0, 1, 1], [], []>} : vector<1x32xbf16>, vector<32x10xbf16>, vector<1x10xf32> -> vector<1x10xf32>
      %c0_94 = arith.constant 0 : index
      %c0_95 = arith.constant 0 : index
      %207 = vector.load %arg18[%c0_94, %c0_95] : memref<1x10xf32, #tpu.memory_space<vmem>>, vector<1x10xf32>
      %208 = arith.addf %206, %207 : vector<1x10xf32>
      %c0_96 = arith.constant 0 : index
      %c0_97 = arith.constant 0 : index
      %c0_98 = arith.constant 0 : index
      %209 = vector.load %arg19[%c0_96, %c0_97, %c0_98] : memref<1x1x10xf32, #tpu.memory_space<vmem>>, vector<1x1x10xf32>
      %210 = vector.shape_cast %209 : vector<1x1x10xf32> to vector<1x10xf32>
      %211 = vector.shape_cast %208 : vector<1x10xf32> to vector<1x1x10xf32>
      tpu.vector_store %arg19[%c0_96, %c0_97, %c0_98], %211 {strides = array<i32>} : memref<1x1x10xf32, #tpu.memory_space<vmem>>, vector<1x1x10xf32>,
    } else {
    }
    return
  }
  func.func @transform_1(%arg0: i32, %arg1: i32) -> (i32, i32, i32) {
    %c0_i32 = arith.constant 0 : i32
    %c0_i32_0 = arith.constant 0 : i32
    %c0_i32_1 = arith.constant 0 : i32
    return %arg1, %c0_i32, %c0_i32_0 : i32, i32, i32
  }
  func.func @transform_2(%arg0: i32, %arg1: i32) -> (i32, i32, i32) {
    %c0_i32 = arith.constant 0 : i32
    %c0_i32_0 = arith.constant 0 : i32
    %c0_i32_1 = arith.constant 0 : i32
    return %arg1, %c0_i32, %c0_i32_0 : i32, i32, i32
  }
  func.func @transform_3(%arg0: i32, %arg1: i32) -> (i32, i32, i32) {
    %c0_i32 = arith.constant 0 : i32
    %c0_i32_0 = arith.constant 0 : i32
    %c0_i32_1 = arith.constant 0 : i32
    return %arg1, %c0_i32, %c0_i32_0 : i32, i32, i32
  }
  func.func @transform_4(%arg0: i32, %arg1: i32) -> (i32, i32, i32) {
    %c0_i32 = arith.constant 0 : i32
    %c0_i32_0 = arith.constant 0 : i32
    %c0_i32_1 = arith.constant 0 : i32
    return %arg1, %c0_i32, %c0_i32_0 : i32, i32, i32
  }
  func.func @transform_5(%arg0: i32, %arg1: i32) -> (i32, i32, i32) {
    %c0_i32 = arith.constant 0 : i32
    %c0_i32_0 = arith.constant 0 : i32
    %c0_i32_1 = arith.constant 0 : i32
    return %arg1, %c0_i32, %c0_i32_0 : i32, i32, i32
  }
  func.func @transform_6(%arg0: i32, %arg1: i32) -> (i32, i32, i32) {
    %c0_i32 = arith.constant 0 : i32
    %c0_i32_0 = arith.constant 0 : i32
    %c0_i32_1 = arith.constant 0 : i32
    return %arg1, %c0_i32, %c0_i32_0 : i32, i32, i32
  }
  func.func @transform_7(%arg0: i32, %arg1: i32) -> (i32, i32, i32) {
    %c0_i32 = arith.constant 0 : i32
    %c0_i32_0 = arith.constant 0 : i32
    %c0_i32_1 = arith.constant 0 : i32
    return %arg1, %c0_i32, %c0_i32_0 : i32, i32, i32
  }
  func.func @transform_8(%arg0: i32, %arg1: i32) -> (i32, i32, i32) {
    %c0_i32 = arith.constant 0 : i32
    %c0_i32_0 = arith.constant 0 : i32
    %c0_i32_1 = arith.constant 0 : i32
    return %arg1, %c0_i32, %c0_i32_0 : i32, i32, i32
  }
  func.func @transform_9(%arg0: i32, %arg1: i32) -> (i32, i32, i32) {
    %c0_i32 = arith.constant 0 : i32
    %c0_i32_0 = arith.constant 0 : i32
    %c0_i32_1 = arith.constant 0 : i32
    return %arg1, %c0_i32, %c0_i32_0 : i32, i32, i32
  }
  func.func @transform_10(%arg0: i32, %arg1: i32) -> (i32, i32, i32) {
    %c0_i32 = arith.constant 0 : i32
    %c0_i32_0 = arith.constant 0 : i32
    %c0_i32_1 = arith.constant 0 : i32
    return %arg1, %c0_i32, %c0_i32_0 : i32, i32, i32
  }
  func.func @transform_11(%arg0: i32, %arg1: i32) -> (i32, i32, i32) {
    %c0_i32 = arith.constant 0 : i32
    %c0_i32_0 = arith.constant 0 : i32
    %c0_i32_1 = arith.constant 0 : i32
    return %arg1, %c0_i32, %c0_i32_0 : i32, i32, i32
  }
  func.func @transform_12(%arg0: i32, %arg1: i32) -> (i32, i32, i32) {
    %c0_i32 = arith.constant 0 : i32
    %c0_i32_0 = arith.constant 0 : i32
    %c0_i32_1 = arith.constant 0 : i32
    return %arg1, %c0_i32, %c0_i32_0 : i32, i32, i32
  }
  func.func @transform_13(%arg0: i32, %arg1: i32) -> (i32, i32) {
    %c0_i32 = arith.constant 0 : i32
    %c0_i32_0 = arith.constant 0 : i32
    %c0_i32_1 = arith.constant 0 : i32
    return %c0_i32, %c0_i32_0 : i32, i32
  }
  func.func @transform_14(%arg0: i32, %arg1: i32) -> (i32, i32) {
    %c0_i32 = arith.constant 0 : i32
    %c0_i32_0 = arith.constant 0 : i32
    %c0_i32_1 = arith.constant 0 : i32
    return %c0_i32, %c0_i32_0 : i32, i32
  }
  func.func @transform_15(%arg0: i32, %arg1: i32) -> (i32, i32) {
    %c0_i32 = arith.constant 0 : i32
    %c0_i32_0 = arith.constant 0 : i32
    %c0_i32_1 = arith.constant 0 : i32
    return %c0_i32, %c0_i32_0 : i32, i32
  }
  func.func @transform_16(%arg0: i32, %arg1: i32) -> (i32, i32) {
    %c0_i32 = arith.constant 0 : i32
    %c0_i32_0 = arith.constant 0 : i32
    %c0_i32_1 = arith.constant 0 : i32
    return %c0_i32, %c0_i32_0 : i32, i32
  }
  func.func @transform_17(%arg0: i32, %arg1: i32) -> (i32, i32, i32) {
    %c0_i32 = arith.constant 0 : i32
    %c0_i32_0 = arith.constant 0 : i32
    %c0_i32_1 = arith.constant 0 : i32
    return %arg0, %c0_i32, %c0_i32_0 : i32, i32, i32
  }
}

</mosaic_0001>

<llo_original>
// kernel: vit_forward.2
$region0: #{vit_forward.2}
  #allocation0 [shape = 'u32[]', space=smem, size = 0x4, offset = 0x4, fixed_abs, tag = 'smem constant byte address 0x4 - core index']
  #allocation1 [shape = 'u32[72,128]{1,0:T(1,128)}', space=vmem, size = 0x9000, scoped, tag = 'internal scratch']
  %s0 = inlined_call_operand.vmem [shape: f32[32,48], index: 0, kind: input, shape index: {}]
  %s1 = inlined_call_operand.vmem [shape: bf16[48,32], index: 1, kind: input, shape index: {}]
  %s2 = inlined_call_operand.vmem [shape: f32[1,32], index: 2, kind: input, shape index: {}]
  %s3 = inlined_call_operand.vmem [shape: f32[32,32], index: 3, kind: output, shape index: {}]
  %s4 = sld [smem:[#allocation0]]
  $region22: #{vit_forward.2} parent=0
    _
  %s6 = ssub.s32 1, %s4
  %s7 = scalar_select 0, %s6, %s4
  // Predicated region
  $region2: #{vit_forward.2} parent=0 // pred_check
    _
  $region3: #{vit_forward.2} parent=0 // pred_check_branch
    %9 = sbr.rel (0) target = $region5
  $region4: #{vit_forward.2} parent=0 // pred_region
    _
  $region5: #{vit_forward.2} parent=0 // pred_fallthru
    _
  // Predicated region
  $region6: #{vit_forward.2} parent=0 // pred_check
    _
  $region7: #{vit_forward.2} parent=0 // pred_check_branch
    %11 = sbr.rel (0) target = $region9
  $region8: #{vit_forward.2} parent=0 // pred_region
    _
  $region9: #{vit_forward.2} parent=0 // pred_fallthru
    _
  // Predicated region
  $region10: #{vit_forward.2} parent=0 // pred_check
    _
  $region11: #{vit_forward.2} parent=0 // pred_check_branch
    %13 = sbr.rel (0) target = $region13
  $region12: #{vit_forward.2} parent=0 // pred_region
    _
  $region13: #{vit_forward.2} parent=0 // pred_fallthru
    _
  %v15 = vld [vmem:[%s0] sm:$0xff]
  %v16 = vld [vmem:[%s0 + $0x8] sm:$0xff]
  %v17 = vld [vmem:[%s0 + $0x10] sm:$0xff]
  %v18 = vld [vmem:[%s0 + $0x18] sm:$0xff]
  %v19 = vpack.c.bf16 %v16, %v15
  %v20 = vpack.c.bf16 %v18, %v17
  %v21 = vld [vmem:[%s1] sm:$0xf]
  %v22 = vld [vmem:[%s1 + $0x4] sm:$0xf]
  %v23 = vld [vmem:[%s1 + $0x8] sm:$0xf]
  %v24 = vld [vmem:[%s1 + $0xc] sm:$0xf]
  %v25 = vld [vmem:[%s1 + $0x10] sm:$0xf]
  %v26 = vld [vmem:[%s1 + $0x14] sm:$0xf]
  %v27 = vld [vmem:[%s2] sm:$0x1]
  %v29 = vperm.slane %v27, 0
  %v37 = vunpack.c.l.b16 %v21
  %v38 = vunpack.c.l.b16 %v22
  %v39 = vunpack.c.l.b16 %v23
  %v40 = vunpack.c.l.b16 %v24
  %v41 = vunpack.c.l.b16 %v25
  %v42 = vunpack.c.l.b16 %v26
  %v43 = vpack.c.b16 %v38, %v37
  %v44 = vpack.c.b16 %v40, %v39
  %v45 = vpack.c.b16 %v42, %v41
  %vm49 = vcmask 392192
  %v51 = vsel %vm49, %v19, 0
  %v54 = vsel %vm49, %v20, 0
  %56 = vmatpush.bf16.msra.mxu0 0
  %57 = vmatpush.bf16.msra.mxu0 0
  %58 = vmatpush.bf16.msra.mxu0 0
  %59 = vmatpush.bf16.msra.mxu0 0
  %60 = vmatpush.bf16.msra.mxu0 0
  %61 = vmatpush.bf16.msra.mxu0 %v45
  %62 = vmatpush.bf16.msra.mxu0 %v44
  %63 = vmatpush.bf16.msra.mxu0 %v43
  %64 = vmatmul.bf16.gmra.mxu0 %v51
  %v65 = vpop.f32.mrf.mxu0
  %v66 = vadd.f32 %v29, %v65
  %v67 = vpop.f32.mrf.mxu0
  %v68 = vadd.f32 %v29, %v67
  %69 = vmatmul.bf16.gmra.mxu0 %v54
  %v70 = vpop.f32.mrf.mxu0
  %v71 = vadd.f32 %v29, %v70
  %v72 = vpop.f32.mrf.mxu0
  %v73 = vadd.f32 %v29, %v72
  %74 = vdwg.mxu0
  %vm75 = vcmask 261120
  %76 = vst.msk [vmem:[%s3] sm:$0xff] %vm75, %v66
  %77 = vst.msk [vmem:[%s3 + $0x8] sm:$0xff] %vm75, %v68
  %78 = vst.msk [vmem:[%s3 + $0x10] sm:$0xff] %vm75, %v71
  %79 = vst.msk [vmem:[%s3 + $0x18] sm:$0xff] %vm75, %v73
  // Predicated region
  $region14: #{vit_forward.2} parent=0 // pred_check
    _
  $region15: #{vit_forward.2} parent=0 // pred_check_branch
    %81 = sbr.rel (0) target = $region17
  $region16: #{vit_forward.2} parent=0 // pred_region
    _
  $region17: #{vit_forward.2} parent=0 // pred_fallthru
    _
  // Predicated region
  $region18: #{vit_forward.2} parent=0 // pred_check
    _
  $region19: #{vit_forward.2} parent=0 // pred_check_branch
    %83 = sbr.rel (0) target = $region21
  $region20: #{vit_forward.2} parent=0 // pred_region
    _
  $region21: #{vit_forward.2} parent=0 // pred_fallthru
    _

// kernel: vit_forward.3
$region0: #{vit_forward.3}
  #allocation0 [shape = 'u32[]', space=smem, size = 0x4, offset = 0x4, fixed_abs, tag = 'smem constant byte address 0x4 - core index']
  #allocation1 [shape = 'u32[72,128]{1,0:T(1,128)}', space=vmem, size = 0x9000, scoped, tag = 'internal scratch']
  #allocation2 [shape = 'f32[17,32]{1,0:T(8,128)}', space=vmem, size = 0x3000, scoped, tag = 'scratch operand']
  #allocation3 [shape = 'bf16[17,32]{1,0:T(8,128)(2,1)}', space=vmem, size = 0x1800, scoped, tag = 'scratch operand']
  #allocation7 [shape = 's32[]', space=sflag, size = 0x4, offset = 0, fixed_abs, tag = 'sflag constant byte address 0x0 - dummy sync flag']
  %s0 = inlined_call_operand.vmem [shape: f32[34,32], index: 0, kind: input, shape index: {}]
  %s1 = inlined_call_operand.vmem [shape: bf16[2,32,96], index: 1, kind: input, shape index: {}]
  %s2 = inlined_call_operand.vmem [shape: f32[2,1,96], index: 2, kind: input, shape index: {}]
  %s3 = inlined_call_operand.vmem [shape: bf16[2,32,32], index: 3, kind: input, shape index: {}]
  %s4 = inlined_call_operand.vmem [shape: f32[2,1,32], index: 4, kind: input, shape index: {}]
  %s5 = inlined_call_operand.vmem [shape: f32[2,1,32], index: 5, kind: input, shape index: {}]
  %s6 = inlined_call_operand.vmem [shape: f32[2,1,32], index: 6, kind: input, shape index: {}]
  %s7 = inlined_call_operand.vmem [shape: bf16[2,32,64], index: 7, kind: input, shape index: {}]
  %s8 = inlined_call_operand.vmem [shape: f32[2,1,64], index: 8, kind: input, shape index: {}]
  %s9 = inlined_call_operand.vmem [shape: bf16[2,64,32], index: 9, kind: input, shape index: {}]
  %s10 = inlined_call_operand.vmem [shape: f32[2,1,32], index: 10, kind: input, shape index: {}]
  %s11 = inlined_call_operand.vmem [shape: f32[2,1,32], index: 11, kind: input, shape index: {}]
  %s12 = inlined_call_operand.vmem [shape: f32[2,1,32], index: 12, kind: input, shape index: {}]
  %s13 = inlined_call_operand.vmem [shape: f32[1,32], index: 13, kind: input, shape index: {}]
  %s14 = inlined_call_operand.vmem [shape: f32[1,32], index: 14, kind: input, shape index: {}]
  %s15 = inlined_call_operand.vmem [shape: bf16[32,10], index: 15, kind: input, shape index: {}]
  %s16 = inlined_call_operand.vmem [shape: f32[1,10], index: 16, kind: input, shape index: {}]
  %s17 = inlined_call_operand.hbm [shape: f32[2,1,10], index: 17, kind: output, shape index: {}]
  %s18 = sld [smem:[#allocation0]]
  $region128: #{vit_forward.3} parent=0
    _
  %s20 = ssub.s32 1, %s18
  %s21 = scalar_select 0, %s20, %s18
  $region1: #{vit_forward.3} parent=0
    #allocation4 [shape = 'u8[1024]{0}', space=vmem, size = 0x400, scoped, tag = 'output window, operand 0']
    #allocation5 [shape = 's32[2]{0}', space=sflag, size = 0x8, scoped, tag = 'scoped memory for vit_forward.3']
    %22 = vsyncpa [#allocation5], 0
    %s23 = scalar_lea.sflag [#allocation5], 1
    %24 = vsyncpa %s23, 0
    loop: start=0, step=1, limit=6
    $region2: #{vit_forward.3} parent=1 // loop_pre_header
      _
    $region3: #{vit_forward.3} parent=1 // loop_header
      %s26 = sphi 0, %s30
      %p27 = scmp.ge.s32.totalorder %s26, 6
      %s33 = sphi 0, %s45
      %s34 = sphi 0, %s41
      %s35 = sphi 0, %s33
      %s36 = sphi 0, %s34
      %s37 = sphi 0, %s35
      %s38 = sphi 0, %s36
      %s48 = sphi 0, %s50
      %s51 = sphi 0, %s48
      %s52 = sphi 0, %s51
      %s68 = sphi 0, %s52
      %s74 = sphi 0, %s76
      %s77 = sphi 0, %s74
      %s78 = sphi 0, %s77
      %s94 = sphi 0, %s78
      %s100 = sphi 0, %s102
      %s103 = sphi 0, %s100
      %s104 = sphi 0, %s103
      %s120 = sphi 0, %s104
      %s126 = sphi 0, %s128
      %s129 = sphi 0, %s126
      %s130 = sphi 0, %s129
      %s146 = sphi 0, %s130
      %s152 = sphi 0, %s154
      %s155 = sphi 0, %s152
      %s156 = sphi 0, %s155
      %s172 = sphi 0, %s156
      %s178 = sphi 0, %s180
      %s181 = sphi 0, %s178
      %s182 = sphi 0, %s181
      %s198 = sphi 0, %s182
      %s204 = sphi 0, %s206
      %s207 = sphi 0, %s204
      %s208 = sphi 0, %s207
      %s224 = sphi 0, %s208
      %s230 = sphi 0, %s232
      %s233 = sphi 0, %s230
      %s234 = sphi 0, %s233
      %s250 = sphi 0, %s234
      %s256 = sphi 0, %s258
      %s259 = sphi 0, %s256
      %s260 = sphi 0, %s259
      %s276 = sphi 0, %s260
      %s282 = sphi 0, %s284
      %s285 = sphi 0, %s282
      %s286 = sphi 0, %s285
      %s302 = sphi 0, %s286
      %s308 = sphi 0, %s310
      %s311 = sphi 0, %s308
      %s312 = sphi 0, %s311
      %s328 = sphi 0, %s312
      %s334 = sphi 0, %s336
      %s337 = sphi 0, %s334
      %s338 = sphi 0, %s337
      %s354 = sphi 0, %s338
      %s358 = sphi 0, %s358
      %s360 = sphi 0, %s358
      %s361 = sphi 0, %s360
      %s375 = sphi 0, %s361
      %s379 = sphi 0, %s379
      %s381 = sphi 0, %s379
      %s382 = sphi 0, %s381
      %s396 = sphi 0, %s382
      %s400 = sphi 0, %s400
      %s402 = sphi 0, %s400
      %s403 = sphi 0, %s402
      %s417 = sphi 0, %s403
      %s421 = sphi 0, %s421
      %s423 = sphi 0, %s421
      %s424 = sphi 0, %s423
      %s438 = sphi 0, %s424
      %s444 = sphi 0, %s446
      %s447 = sphi 0, %s444
      %s448 = sphi 0, %s447
      %s464 = sphi 0, %s448
    $region4: #{vit_forward.3} parent=1 // loop_header_branch
      %29 = sbr.rel (%p27) target = $region8
    $region5: #{vit_forward.3} parent=1 // loop_body
      %s31 = ssub.s32 %s26, 1
      %s32 = ssub.s32 %s26, 2
      %s39 = sadd.s32 1, %s34
      %p40 = scmp.ge.s32.totalorder %s39, 2
      %s41 = scalar_select %p40, 0, %s39
      %s42 = sadd.s32 1, %s33
      %s43 = scalar_select %p40, %s42, %s33
      %p44 = scmp.ge.s32.totalorder %s43, 2
      %s45 = scalar_select %p44, 0, %s43
      %s46 = ssub.s32 %s34, %s41
      %p47 = scmp.eq.s32.totalorder %s46, 0
      %s49 = sadd.s32 %s48, 1
      %s50 = scalar_select %p47, %s48, %s49
      %p53 = pneg %p47
      %p54 = scmp.eq.s32.totalorder %s26, 3
      %p55 = por %p53, %p54
      %p56 = scmp.ne.s32.totalorder %s48, %s51
      %p57 = scmp.eq.s32.totalorder %s26, 0
      %p58 = por %p56, %p57
      %p59 = scmp.ne.s32.totalorder %s48, %s51
      %p60 = scmp.eq.s32.totalorder %s31, 3
      %p61 = por %p59, %p60
      %p62 = scmp.ne.s32.totalorder %s51, %s52
      %p63 = scmp.eq.s32.totalorder %s31, 0
      %p64 = por %p62, %p63
      %p65 = scmp.ne.s32.totalorder %s51, %s52
      %p66 = scmp.eq.s32.totalorder %s32, 3
      %p67 = por %p65, %p66
      %p69 = scmp.ne.s32.totalorder %s52, %s68
      %p70 = scmp.eq.s32.totalorder %s32, 0
      %p71 = por %p69, %p70
      %s72 = ssub.s32 %s34, %s41
      %p73 = scmp.eq.s32.totalorder %s72, 0
      %s75 = sadd.s32 %s74, 1
      %s76 = scalar_select %p73, %s74, %s75
      %p79 = pneg %p73
      %p80 = scmp.eq.s32.totalorder %s26, 3
      %p81 = por %p79, %p80
      %p82 = scmp.ne.s32.totalorder %s74, %s77
      %p83 = scmp.eq.s32.totalorder %s26, 0
      %p84 = por %p82, %p83
      %p85 = scmp.ne.s32.totalorder %s74, %s77
      %p86 = scmp.eq.s32.totalorder %s31, 3
      %p87 = por %p85, %p86
      %p88 = scmp.ne.s32.totalorder %s77, %s78
      %p89 = scmp.eq.s32.totalorder %s31, 0
      %p90 = por %p88, %p89
      %p91 = scmp.ne.s32.totalorder %s77, %s78
      %p92 = scmp.eq.s32.totalorder %s32, 3
      %p93 = por %p91, %p92
      %p95 = scmp.ne.s32.totalorder %s78, %s94
      %p96 = scmp.eq.s32.totalorder %s32, 0
      %p97 = por %p95, %p96
      %s98 = ssub.s32 %s34, %s41
      %p99 = scmp.eq.s32.totalorder %s98, 0
      %s101 = sadd.s32 %s100, 1
      %s102 = scalar_select %p99, %s100, %s101
      %p105 = pneg %p99
      %p106 = scmp.eq.s32.totalorder %s26, 3
      %p107 = por %p105, %p106
      %p108 = scmp.ne.s32.totalorder %s100, %s103
      %p109 = scmp.eq.s32.totalorder %s26, 0
      %p110 = por %p108, %p109
      %p111 = scmp.ne.s32.totalorder %s100, %s103
      %p112 = scmp.eq.s32.totalorder %s31, 3
      %p113 = por %p111, %p112
      %p114 = scmp.ne.s32.totalorder %s103, %s104
      %p115 = scmp.eq.s32.totalorder %s31, 0
      %p116 = por %p114, %p115
      %p117 = scmp.ne.s32.totalorder %s103, %s104
      %p118 = scmp.eq.s32.totalorder %s32, 3
      %p119 = por %p117, %p118
      %p121 = scmp.ne.s32.totalorder %s104, %s120
      %p122 = scmp.eq.s32.totalorder %s32, 0
      %p123 = por %p121, %p122
      %s124 = ssub.s32 %s34, %s41
      %p125 = scmp.eq.s32.totalorder %s124, 0
      %s127 = sadd.s32 %s126, 1
      %s128 = scalar_select %p125, %s126, %s127
      %p131 = pneg %p125
      %p132 = scmp.eq.s32.totalorder %s26, 3
      %p133 = por %p131, %p132
      %p134 = scmp.ne.s32.totalorder %s126, %s129
      %p135 = scmp.eq.s32.totalorder %s26, 0
      %p136 = por %p134, %p135
      %p137 = scmp.ne.s32.totalorder %s126, %s129
      %p138 = scmp.eq.s32.totalorder %s31, 3
      %p139 = por %p137, %p138
      %p140 = scmp.ne.s32.totalorder %s129, %s130
      %p141 = scmp.eq.s32.totalorder %s31, 0
      %p142 = por %p140, %p141
      %p143 = scmp.ne.s32.totalorder %s129, %s130
      %p144 = scmp.eq.s32.totalorder %s32, 3
      %p145 = por %p143, %p144
      %p147 = scmp.ne.s32.totalorder %s130, %s146
      %p148 = scmp.eq.s32.totalorder %s32, 0
      %p149 = por %p147, %p148
      %s150 = ssub.s32 %s34, %s41
      %p151 = scmp.eq.s32.totalorder %s150, 0
      %s153 = sadd.s32 %s152, 1
      %s154 = scalar_select %p151, %s152, %s153
      %p157 = pneg %p151
      %p158 = scmp.eq.s32.totalorder %s26, 3
      %p159 = por %p157, %p158
      %p160 = scmp.ne.s32.totalorder %s152, %s155
      %p161 = scmp.eq.s32.totalorder %s26, 0
      %p162 = por %p160, %p161
      %p163 = scmp.ne.s32.totalorder %s152, %s155
      %p164 = scmp.eq.s32.totalorder %s31, 3
      %p165 = por %p163, %p164
      %p166 = scmp.ne.s32.totalorder %s155, %s156
      %p167 = scmp.eq.s32.totalorder %s31, 0
      %p168 = por %p166, %p167
      %p169 = scmp.ne.s32.totalorder %s155, %s156
      %p170 = scmp.eq.s32.totalorder %s32, 3
      %p171 = por %p169, %p170
      %p173 = scmp.ne.s32.totalorder %s156, %s172
      %p174 = scmp.eq.s32.totalorder %s32, 0
      %p175 = por %p173, %p174
      %s176 = ssub.s32 %s34, %s41
      %p177 = scmp.eq.s32.totalorder %s176, 0
      %s179 = sadd.s32 %s178, 1
      %s180 = scalar_select %p177, %s178, %s179
      %p183 = pneg %p177
      %p184 = scmp.eq.s32.totalorder %s26, 3
      %p185 = por %p183, %p184
      %p186 = scmp.ne.s32.totalorder %s178, %s181
      %p187 = scmp.eq.s32.totalorder %s26, 0
      %p188 = por %p186, %p187
      %p189 = scmp.ne.s32.totalorder %s178, %s181
      %p190 = scmp.eq.s32.totalorder %s31, 3
      %p191 = por %p189, %p190
      %p192 = scmp.ne.s32.totalorder %s181, %s182
      %p193 = scmp.eq.s32.totalorder %s31, 0
      %p194 = por %p192, %p193
      %p195 = scmp.ne.s32.totalorder %s181, %s182
      %p196 = scmp.eq.s32.totalorder %s32, 3
      %p197 = por %p195, %p196
      %p199 = scmp.ne.s32.totalorder %s182, %s198
      %p200 = scmp.eq.s32.totalorder %s32, 0
      %p201 = por %p199, %p200
      %s202 = ssub.s32 %s34, %s41
      %p203 = scmp.eq.s32.totalorder %s202, 0
      %s205 = sadd.s32 %s204, 1
      %s206 = scalar_select %p203, %s204, %s205
      %p209 = pneg %p203
      %p210 = scmp.eq.s32.totalorder %s26, 3
      %p211 = por %p209, %p210
      %p212 = scmp.ne.s32.totalorder %s204, %s207
      %p213 = scmp.eq.s32.totalorder %s26, 0
      %p214 = por %p212, %p213
      %p215 = scmp.ne.s32.totalorder %s204, %s207
      %p216 = scmp.eq.s32.totalorder %s31, 3
      %p217 = por %p215, %p216
      %p218 = scmp.ne.s32.totalorder %s207, %s208
      %p219 = scmp.eq.s32.totalorder %s31, 0
      %p220 = por %p218, %p219
      %p221 = scmp.ne.s32.totalorder %s207, %s208
      %p222 = scmp.eq.s32.totalorder %s32, 3
      %p223 = por %p221, %p222
      %p225 = scmp.ne.s32.totalorder %s208, %s224
      %p226 = scmp.eq.s32.totalorder %s32, 0
      %p227 = por %p225, %p226
      %s228 = ssub.s32 %s34, %s41
      %p229 = scmp.eq.s32.totalorder %s228, 0
      %s231 = sadd.s32 %s230, 1
      %s232 = scalar_select %p229, %s230, %s231
      %p235 = pneg %p229
      %p236 = scmp.eq.s32.totalorder %s26, 3
      %p237 = por %p235, %p236
      %p238 = scmp.ne.s32.totalorder %s230, %s233
      %p239 = scmp.eq.s32.totalorder %s26, 0
      %p240 = por %p238, %p239
      %p241 = scmp.ne.s32.totalorder %s230, %s233
      %p242 = scmp.eq.s32.totalorder %s31, 3
      %p243 = por %p241, %p242
      %p244 = scmp.ne.s32.totalorder %s233, %s234
      %p245 = scmp.eq.s32.totalorder %s31, 0
      %p246 = por %p244, %p245
      %p247 = scmp.ne.s32.totalorder %s233, %s234
      %p248 = scmp.eq.s32.totalorder %s32, 3
      %p249 = por %p247, %p248
      %p251 = scmp.ne.s32.totalorder %s234, %s250
      %p252 = scmp.eq.s32.totalorder %s32, 0
      %p253 = por %p251, %p252
      %s254 = ssub.s32 %s34, %s41
      %p255 = scmp.eq.s32.totalorder %s254, 0
      %s257 = sadd.s32 %s256, 1
      %s258 = scalar_select %p255, %s256, %s257
      %p261 = pneg %p255
      %p262 = scmp.eq.s32.totalorder %s26, 3
      %p263 = por %p261, %p262
      %p264 = scmp.ne.s32.totalorder %s256, %s259
      %p265 = scmp.eq.s32.totalorder %s26, 0
      %p266 = por %p264, %p265
      %p267 = scmp.ne.s32.totalorder %s256, %s259
      %p268 = scmp.eq.s32.totalorder %s31, 3
      %p269 = por %p267, %p268
      %p270 = scmp.ne.s32.totalorder %s259, %s260
      %p271 = scmp.eq.s32.totalorder %s31, 0
      %p272 = por %p270, %p271
      %p273 = scmp.ne.s32.totalorder %s259, %s260
      %p274 = scmp.eq.s32.totalorder %s32, 3
      %p275 = por %p273, %p274
      %p277 = scmp.ne.s32.totalorder %s260, %s276
      %p278 = scmp.eq.s32.totalorder %s32, 0
      %p279 = por %p277, %p278
      %s280 = ssub.s32 %s34, %s41
      %p281 = scmp.eq.s32.totalorder %s280, 0
      %s283 = sadd.s32 %s282, 1
      %s284 = scalar_select %p281, %s282, %s283
      %p287 = pneg %p281
      %p288 = scmp.eq.s32.totalorder %s26, 3
      %p289 = por %p287, %p288
      %p290 = scmp.ne.s32.totalorder %s282, %s285
      %p291 = scmp.eq.s32.totalorder %s26, 0
      %p292 = por %p290, %p291
      %p293 = scmp.ne.s32.totalorder %s282, %s285
      %p294 = scmp.eq.s32.totalorder %s31, 3
      %p295 = por %p293, %p294
      %p296 = scmp.ne.s32.totalorder %s285, %s286
      %p297 = scmp.eq.s32.totalorder %s31, 0
      %p298 = por %p296, %p297
      %p299 = scmp.ne.s32.totalorder %s285, %s286
      %p300 = scmp.eq.s32.totalorder %s32, 3
      %p301 = por %p299, %p300
      %p303 = scmp.ne.s32.totalorder %s286, %s302
      %p304 = scmp.eq.s32.totalorder %s32, 0
      %p305 = por %p303, %p304
      %s306 = ssub.s32 %s34, %s41
      %p307 = scmp.eq.s32.totalorder %s306, 0
      %s309 = sadd.s32 %s308, 1
      %s310 = scalar_select %p307, %s308, %s309
      %p313 = pneg %p307
      %p314 = scmp.eq.s32.totalorder %s26, 3
      %p315 = por %p313, %p314
      %p316 = scmp.ne.s32.totalorder %s308, %s311
      %p317 = scmp.eq.s32.totalorder %s26, 0
      %p318 = por %p316, %p317
      %p319 = scmp.ne.s32.totalorder %s308, %s311
      %p320 = scmp.eq.s32.totalorder %s31, 3
      %p321 = por %p319, %p320
      %p322 = scmp.ne.s32.totalorder %s311, %s312
      %p323 = scmp.eq.s32.totalorder %s31, 0
      %p324 = por %p322, %p323
      %p325 = scmp.ne.s32.totalorder %s311, %s312
      %p326 = scmp.eq.s32.totalorder %s32, 3
      %p327 = por %p325, %p326
      %p329 = scmp.ne.s32.totalorder %s312, %s328
      %p330 = scmp.eq.s32.totalorder %s32, 0
      %p331 = por %p329, %p330
      %s332 = ssub.s32 %s34, %s41
      %p333 = scmp.eq.s32.totalorder %s332, 0
      %s335 = sadd.s32 %s334, 1
      %s336 = scalar_select %p333, %s334, %s335
      %p339 = pneg %p333
      %p340 = scmp.eq.s32.totalorder %s26, 3
      %p341 = por %p339, %p340
      %p342 = scmp.ne.s32.totalorder %s334, %s337
      %p343 = scmp.eq.s32.totalorder %s26, 0
      %p344 = por %p342, %p343
      %p345 = scmp.ne.s32.totalorder %s334, %s337
      %p346 = scmp.eq.s32.totalorder %s31, 3
      %p347 = por %p345, %p346
      %p348 = scmp.ne.s32.totalorder %s337, %s338
      %p349 = scmp.eq.s32.totalorder %s31, 0
      %p350 = por %p348, %p349
      %p351 = scmp.ne.s32.totalorder %s337, %s338
      %p352 = scmp.eq.s32.totalorder %s32, 3
      %p353 = por %p351, %p352
      %p355 = scmp.ne.s32.totalorder %s338, %s354
      %p356 = scmp.eq.s32.totalorder %s32, 0
      %p357 = por %p355, %p356
      %s359 = sadd.s32 %s358, 1
      %p362 = scmp.eq.s32.totalorder %s26, 3
      %p363 = scmp.ne.s32.totalorder %s358, %s360
      %p364 = scmp.eq.s32.totalorder %s26, 0
      %p365 = por %p363, %p364
      %p366 = scmp.ne.s32.totalorder %s358, %s360
      %p367 = scmp.eq.s32.totalorder %s31, 3
      %p368 = por %p366, %p367
      %p369 = scmp.ne.s32.totalorder %s360, %s361
      %p370 = scmp.eq.s32.totalorder %s31, 0
      %p371 = por %p369, %p370
      %p372 = scmp.ne.s32.totalorder %s360, %s361
      %p373 = scmp.eq.s32.totalorder %s32, 3
      %p374 = por %p372, %p373
      %p376 = scmp.ne.s32.totalorder %s361, %s375
      %p377 = scmp.eq.s32.totalorder %s32, 0
      %p378 = por %p376, %p377
      %s380 = sadd.s32 %s379, 1
      %p383 = scmp.eq.s32.totalorder %s26, 3
      %p384 = scmp.ne.s32.totalorder %s379, %s381
      %p385 = scmp.eq.s32.totalorder %s26, 0
      %p386 = por %p384, %p385
      %p387 = scmp.ne.s32.totalorder %s379, %s381
      %p388 = scmp.eq.s32.totalorder %s31, 3
      %p389 = por %p387, %p388
      %p390 = scmp.ne.s32.totalorder %s381, %s382
      %p391 = scmp.eq.s32.totalorder %s31, 0
      %p392 = por %p390, %p391
      %p393 = scmp.ne.s32.totalorder %s381, %s382
      %p394 = scmp.eq.s32.totalorder %s32, 3
      %p395 = por %p393, %p394
      %p397 = scmp.ne.s32.totalorder %s382, %s396
      %p398 = scmp.eq.s32.totalorder %s32, 0
      %p399 = por %p397, %p398
      %s401 = sadd.s32 %s400, 1
      %p404 = scmp.eq.s32.totalorder %s26, 3
      %p405 = scmp.ne.s32.totalorder %s400, %s402
      %p406 = scmp.eq.s32.totalorder %s26, 0
      %p407 = por %p405, %p406
      %p408 = scmp.ne.s32.totalorder %s400, %s402
      %p409 = scmp.eq.s32.totalorder %s31, 3
      %p410 = por %p408, %p409
      %p411 = scmp.ne.s32.totalorder %s402, %s403
      %p412 = scmp.eq.s32.totalorder %s31, 0
      %p413 = por %p411, %p412
      %p414 = scmp.ne.s32.totalorder %s402, %s403
      %p415 = scmp.eq.s32.totalorder %s32, 3
      %p416 = por %p414, %p415
      %p418 = scmp.ne.s32.totalorder %s403, %s417
      %p419 = scmp.eq.s32.totalorder %s32, 0
      %p420 = por %p418, %p419
      %s422 = sadd.s32 %s421, 1
      %p425 = scmp.eq.s32.totalorder %s26, 3
      %p426 = scmp.ne.s32.totalorder %s421, %s423
      %p427 = scmp.eq.s32.totalorder %s26, 0
      %p428 = por %p426, %p427
      %p429 = scmp.ne.s32.totalorder %s421, %s423
      %p430 = scmp.eq.s32.totalorder %s31, 3
      %p431 = por %p429, %p430
      %p432 = scmp.ne.s32.totalorder %s423, %s424
      %p433 = scmp.eq.s32.totalorder %s31, 0
      %p434 = por %p432, %p433
      %p435 = scmp.ne.s32.totalorder %s423, %s424
      %p436 = scmp.eq.s32.totalorder %s32, 3
      %p437 = por %p435, %p436
      %p439 = scmp.ne.s32.totalorder %s424, %s438
      %p440 = scmp.eq.s32.totalorder %s32, 0
      %p441 = por %p439, %p440
      %s442 = ssub.s32 %s33, %s45
      %p443 = scmp.eq.s32.totalorder %s442, 0
      %s445 = sadd.s32 %s444, 1
      %s446 = scalar_select %p443, %s444, %s445
      %p449 = pneg %p443
      %p450 = scmp.eq.s32.totalorder %s26, 3
      %p451 = por %p449, %p450
      %p452 = scmp.ne.s32.totalorder %s444, %s447
      %p453 = scmp.eq.s32.totalorder %s26, 0
      %p454 = por %p452, %p453
      %p455 = scmp.ne.s32.totalorder %s444, %s447
      %p456 = scmp.eq.s32.totalorder %s31, 3
      %p457 = por %p455, %p456
      %p458 = scmp.ne.s32.totalorder %s447, %s448
      %p459 = scmp.eq.s32.totalorder %s31, 0
      %p460 = por %p458, %p459
      %p461 = scmp.ne.s32.totalorder %s447, %s448
      %p462 = scmp.eq.s32.totalorder %s32, 3
      %p463 = por %p461, %p462
      %p465 = scmp.ne.s32.totalorder %s448, %s464
      %p466 = scmp.eq.s32.totalorder %s32, 0
      %p467 = por %p465, %p466
      %p468 = scmp.le.s32.totalorder 1, %s26
      %p469 = scmp.lt.s32.totalorder %s26, 5
      %p470 = pnand %p468, %p469
      %p471 = pneg %p470
      // Predicated region
      $region9: #{vit_forward.3} parent=5 // pred_check
        _
      $region10: #{vit_forward.3} parent=5 // pred_check_branch
        %473 = sbr.rel (%p470) target = $region12
      $region11: #{vit_forward.3} parent=5 // pred_region
        %s474 = ssub.s32 %s26, 1
        // Predicated region
        $region13: #{vit_forward.3} parent=11 // pred_check
          %p475 = pneg %p371
        $region14: #{vit_forward.3} parent=11 // pred_check_branch
          %477 = sbr.rel (%p475) target = $region16
        $region15: #{vit_forward.3} parent=11 // pred_region
          _
        $region16: #{vit_forward.3} parent=11 // pred_fallthru
          _
        // Predicated region
        $region17: #{vit_forward.3} parent=11 // pred_check
          %p478 = pneg %p392
        $region18: #{vit_forward.3} parent=11 // pred_check_branch
          %480 = sbr.rel (%p478) target = $region20
        $region19: #{vit_forward.3} parent=11 // pred_region
          _
        $region20: #{vit_forward.3} parent=11 // pred_fallthru
          _
        // Predicated region
        $region21: #{vit_forward.3} parent=11 // pred_check
          %p481 = pneg %p413
        $region22: #{vit_forward.3} parent=11 // pred_check_branch
          %483 = sbr.rel (%p481) target = $region24
        $region23: #{vit_forward.3} parent=11 // pred_region
          _
        $region24: #{vit_forward.3} parent=11 // pred_fallthru
          _
        // Predicated region
        $region25: #{vit_forward.3} parent=11 // pred_check
          %p484 = pneg %p434
        $region26: #{vit_forward.3} parent=11 // pred_check_branch
          %486 = sbr.rel (%p484) target = $region28
        $region27: #{vit_forward.3} parent=11 // pred_region
          _
        $region28: #{vit_forward.3} parent=11 // pred_fallthru
          _
      $region12: #{vit_forward.3} parent=5 // pred_fallthru
        _
      %p487 = scmp.lt.s32.totalorder %s26, 4
      // Predicated region
      $region29: #{vit_forward.3} parent=5 // pred_check
        %p488 = pneg %p487
      $region30: #{vit_forward.3} parent=5 // pred_check_branch
        %490 = sbr.rel (%p488) target = $region32
      $region31: #{vit_forward.3} parent=5 // pred_region
        // Predicated region
        $region33: #{vit_forward.3} parent=31 // pred_check
          %p491 = pneg %p58
        $region34: #{vit_forward.3} parent=31 // pred_check_branch
          %493 = sbr.rel (%p491) target = $region36
        $region35: #{vit_forward.3} parent=31 // pred_region
          %p494 = scmp.lt.s32.totalorder %s34, 1
          %s495 = scalar_select %p494, %s34, 1
          %s496 = smul.addr %s495, 4
          %s497 = smul.addr %s496, 4
          %s498 = scalar_lea.vmem %s1, %s497
        $region36: #{vit_forward.3} parent=31 // pred_fallthru
          _
        // Predicated region
        $region37: #{vit_forward.3} parent=31 // pred_check
          %p499 = pneg %p84
        $region38: #{vit_forward.3} parent=31 // pred_check_branch
          %501 = sbr.rel (%p499) target = $region40
        $region39: #{vit_forward.3} parent=31 // pred_region
          %p502 = scmp.lt.s32.totalorder %s34, 1
          %s503 = scalar_select %p502, %s34, 1
          %s504 = scalar_lea.vmem %s2, %s503
        $region40: #{vit_forward.3} parent=31 // pred_fallthru
          _
        // Predicated region
        $region41: #{vit_forward.3} parent=31 // pred_check
          %p505 = pneg %p110
        $region42: #{vit_forward.3} parent=31 // pred_check_branch
          %507 = sbr.rel (%p505) target = $region44
        $region43: #{vit_forward.3} parent=31 // pred_region
          %p508 = scmp.lt.s32.totalorder %s34, 1
          %s509 = scalar_select %p508, %s34, 1
          %s510 = smul.addr %s509, 4
          %s511 = smul.addr %s510, 4
          %s512 = scalar_lea.vmem %s3, %s511
        $region44: #{vit_forward.3} parent=31 // pred_fallthru
          _
        // Predicated region
        $region45: #{vit_forward.3} parent=31 // pred_check
          %p513 = pneg %p136
        $region46: #{vit_forward.3} parent=31 // pred_check_branch
          %515 = sbr.rel (%p513) target = $region48
        $region47: #{vit_forward.3} parent=31 // pred_region
          %p516 = scmp.lt.s32.totalorder %s34, 1
          %s517 = scalar_select %p516, %s34, 1
          %s518 = scalar_lea.vmem %s4, %s517
        $region48: #{vit_forward.3} parent=31 // pred_fallthru
          _
        // Predicated region
        $region49: #{vit_forward.3} parent=31 // pred_check
          %p519 = pneg %p162
        $region50: #{vit_forward.3} parent=31 // pred_check_branch
          %521 = sbr.rel (%p519) target = $region52
        $region51: #{vit_forward.3} parent=31 // pred_region
          %p522 = scmp.lt.s32.totalorder %s34, 1
          %s523 = scalar_select %p522, %s34, 1
          %s524 = scalar_lea.vmem %s5, %s523
        $region52: #{vit_forward.3} parent=31 // pred_fallthru
          _
        // Predicated region
        $region53: #{vit_forward.3} parent=31 // pred_check
          %p525 = pneg %p188
        $region54: #{vit_forward.3} parent=31 // pred_check_branch
          %527 = sbr.rel (%p525) target = $region56
        $region55: #{vit_forward.3} parent=31 // pred_region
          %p528 = scmp.lt.s32.totalorder %s34, 1
          %s529 = scalar_select %p528, %s34, 1
          %s530 = scalar_lea.vmem %s6, %s529
        $region56: #{vit_forward.3} parent=31 // pred_fallthru
          _
        // Predicated region
        $region57: #{vit_forward.3} parent=31 // pred_check
          %p531 = pneg %p214
        $region58: #{vit_forward.3} parent=31 // pred_check_branch
          %533 = sbr.rel (%p531) target = $region60
        $region59: #{vit_forward.3} parent=31 // pred_region
          %p534 = scmp.lt.s32.totalorder %s34, 1
          %s535 = scalar_select %p534, %s34, 1
          %s536 = smul.addr %s535, 4
          %s537 = smul.addr %s536, 4
          %s538 = scalar_lea.vmem %s7, %s537
        $region60: #{vit_forward.3} parent=31 // pred_fallthru
          _
        // Predicated region
        $region61: #{vit_forward.3} parent=31 // pred_check
          %p539 = pneg %p240
        $region62: #{vit_forward.3} parent=31 // pred_check_branch
          %541 = sbr.rel (%p539) target = $region64
        $region63: #{vit_forward.3} parent=31 // pred_region
          %p542 = scmp.lt.s32.totalorder %s34, 1
          %s543 = scalar_select %p542, %s34, 1
          %s544 = scalar_lea.vmem %s8, %s543
        $region64: #{vit_forward.3} parent=31 // pred_fallthru
          _
        // Predicated region
        $region65: #{vit_forward.3} parent=31 // pred_check
          %p545 = pneg %p266
        $region66: #{vit_forward.3} parent=31 // pred_check_branch
          %547 = sbr.rel (%p545) target = $region68
        $region67: #{vit_forward.3} parent=31 // pred_region
          %p548 = scmp.lt.s32.totalorder %s34, 1
          %s549 = scalar_select %p548, %s34, 1
          %s550 = smul.addr %s549, 8
          %s551 = smul.addr %s550, 4
          %s552 = scalar_lea.vmem %s9, %s551
        $region68: #{vit_forward.3} parent=31 // pred_fallthru
          _
        // Predicated region
        $region69: #{vit_forward.3} parent=31 // pred_check
          %p553 = pneg %p292
        $region70: #{vit_forward.3} parent=31 // pred_check_branch
          %555 = sbr.rel (%p553) target = $region72
        $region71: #{vit_forward.3} parent=31 // pred_region
          %p556 = scmp.lt.s32.totalorder %s34, 1
          %s557 = scalar_select %p556, %s34, 1
          %s558 = scalar_lea.vmem %s10, %s557
        $region72: #{vit_forward.3} parent=31 // pred_fallthru
          _
        // Predicated region
        $region73: #{vit_forward.3} parent=31 // pred_check
          %p559 = pneg %p318
        $region74: #{vit_forward.3} parent=31 // pred_check_branch
          %561 = sbr.rel (%p559) target = $region76
        $region75: #{vit_forward.3} parent=31 // pred_region
          %p562 = scmp.lt.s32.totalorder %s34, 1
          %s563 = scalar_select %p562, %s34, 1
          %s564 = scalar_lea.vmem %s11, %s563
        $region76: #{vit_forward.3} parent=31 // pred_fallthru
          _
        // Predicated region
        $region77: #{vit_forward.3} parent=31 // pred_check
          %p565 = pneg %p344
        $region78: #{vit_forward.3} parent=31 // pred_check_branch
          %567 = sbr.rel (%p565) target = $region80
        $region79: #{vit_forward.3} parent=31 // pred_region
          %p568 = scmp.lt.s32.totalorder %s34, 1
          %s569 = scalar_select %p568, %s34, 1
          %s570 = scalar_lea.vmem %s12, %s569
        $region80: #{vit_forward.3} parent=31 // pred_fallthru
          _
      $region32: #{vit_forward.3} parent=5 // pred_fallthru
        _
      %p571 = scmp.le.s32.totalorder 1, %s26
      %p572 = scmp.lt.s32.totalorder %s26, 5
      %p573 = pnand %p571, %p572
      %p574 = pneg %p573
      // Predicated region
      $region81: #{vit_forward.3} parent=5 // pred_check
        _
      $region82: #{vit_forward.3} parent=5 // pred_check_branch
        %576 = sbr.rel (%p573) target = $region84
      $region83: #{vit_forward.3} parent=5 // pred_region
        %s577 = ssub.s32 %s26, 1
        %p578 = scmp.lt.s32.totalorder %s36, 1
        %s579 = scalar_select %p578, %s36, 1
        %s580 = smul.addr %s579, 4
        %s581 = smul.addr %s580, 4
        %s582 = scalar_lea.vmem %s1, %s581
        %p583 = pneg %p64
        %p584 = pneg %p61
        %p585 = scmp.lt.s32.totalorder %s36, 1
        %s586 = scalar_select %p585, %s36, 1
        %s587 = scalar_lea.vmem %s2, %s586
        %p588 = pneg %p90
        %p589 = pneg %p87
        %p590 = scmp.lt.s32.totalorder %s36, 1
        %s591 = scalar_select %p590, %s36, 1
        %s592 = smul.addr %s591, 4
        %s593 = smul.addr %s592, 4
        %s594 = scalar_lea.vmem %s3, %s593
        %p595 = pneg %p116
        %p596 = pneg %p113
        %p597 = scmp.lt.s32.totalorder %s36, 1
        %s598 = scalar_select %p597, %s36, 1
        %s599 = scalar_lea.vmem %s4, %s598
        %p600 = pneg %p142
        %p601 = pneg %p139
        %p602 = scmp.lt.s32.totalorder %s36, 1
        %s603 = scalar_select %p602, %s36, 1
        %s604 = scalar_lea.vmem %s5, %s603
        %p605 = pneg %p168
        %p606 = pneg %p165
        %p607 = scmp.lt.s32.totalorder %s36, 1
        %s608 = scalar_select %p607, %s36, 1
        %s609 = scalar_lea.vmem %s6, %s608
        %p610 = pneg %p194
        %p611 = pneg %p191
        %p612 = scmp.lt.s32.totalorder %s36, 1
        %s613 = scalar_select %p612, %s36, 1
        %s614 = smul.addr %s613, 4
        %s615 = smul.addr %s614, 4
        %s616 = scalar_lea.vmem %s7, %s615
        %p617 = pneg %p220
        %p618 = pneg %p217
        %p619 = scmp.lt.s32.totalorder %s36, 1
        %s620 = scalar_select %p619, %s36, 1
        %s621 = scalar_lea.vmem %s8, %s620
        %p622 = pneg %p246
        %p623 = pneg %p243
        %p624 = scmp.lt.s32.totalorder %s36, 1
        %s625 = scalar_select %p624, %s36, 1
        %s626 = smul.addr %s625, 8
        %s627 = smul.addr %s626, 4
        %s628 = scalar_lea.vmem %s9, %s627
        %p629 = pneg %p272
        %p630 = pneg %p269
        %p631 = scmp.lt.s32.totalorder %s36, 1
        %s632 = scalar_select %p631, %s36, 1
        %s633 = scalar_lea.vmem %s10, %s632
        %p634 = pneg %p298
        %p635 = pneg %p295
        %p636 = scmp.lt.s32.totalorder %s36, 1
        %s637 = scalar_select %p636, %s36, 1
        %s638 = scalar_lea.vmem %s11, %s637
        %p639 = pneg %p324
        %p640 = pneg %p321
        %p641 = scmp.lt.s32.totalorder %s36, 1
        %s642 = scalar_select %p641, %s36, 1
        %s643 = scalar_lea.vmem %s12, %s642
        %p644 = pneg %p350
        %p645 = pneg %p347
        %p646 = pneg %p371
        %p647 = pneg %p368
        %p648 = pneg %p392
        %p649 = pneg %p389
        %p650 = pneg %p413
        %p651 = pneg %p410
        %p652 = pneg %p434
        %p653 = pneg %p431
        %p654 = pneg %p460
        %p655 = pneg %p457
        %s656 = sand.u32 %s447, 1
        %s657 = scalar_lea.sflag [#allocation5], %s656
        %s658 = sand.u32 %s447, 1
        %s659 = scalar_lea.vmem [#allocation4], %s658
        %p660 = scmp.lt.s32.totalorder %s36, 1
        %s661 = scalar_select %p660, %s36, 1
        %s662 = smul.addr %s661, 4
        %s663 = smul.addr %s662, 4
        %s664 = scalar_lea.vmem %s1, %s663
        %p665 = scmp.lt.s32.totalorder %s36, 1
        %s666 = scalar_select %p665, %s36, 1
        %s667 = scalar_lea.vmem %s2, %s666
        %p668 = scmp.lt.s32.totalorder %s36, 1
        %s669 = scalar_select %p668, %s36, 1
        %s670 = smul.addr %s669, 4
        %s671 = smul.addr %s670, 4
        %s672 = scalar_lea.vmem %s3, %s671
        %p673 = scmp.lt.s32.totalorder %s36, 1
        %s674 = scalar_select %p673, %s36, 1
        %s675 = scalar_lea.vmem %s4, %s674
        %p676 = scmp.lt.s32.totalorder %s36, 1
        %s677 = scalar_select %p676, %s36, 1
        %s678 = scalar_lea.vmem %s5, %s677
        %p679 = scmp.lt.s32.totalorder %s36, 1
        %s680 = scalar_select %p679, %s36, 1
        %s681 = scalar_lea.vmem %s6, %s680
        %p682 = scmp.lt.s32.totalorder %s36, 1
        %s683 = scalar_select %p682, %s36, 1
        %s684 = smul.addr %s683, 4
        %s685 = smul.addr %s684, 4
        %s686 = scalar_lea.vmem %s7, %s685
        %p687 = scmp.lt.s32.totalorder %s36, 1
        %s688 = scalar_select %p687, %s36, 1
        %s689 = scalar_lea.vmem %s8, %s688
        %p690 = scmp.lt.s32.totalorder %s36, 1
        %s691 = scalar_select %p690, %s36, 1
        %s692 = smul.addr %s691, 8
        %s693 = smul.addr %s692, 4
        %s694 = scalar_lea.vmem %s9, %s693
        %p695 = scmp.lt.s32.totalorder %s36, 1
        %s696 = scalar_select %p695, %s36, 1
        %s697 = scalar_lea.vmem %s10, %s696
        %p698 = scmp.lt.s32.totalorder %s36, 1
        %s699 = scalar_select %p698, %s36, 1
        %s700 = scalar_lea.vmem %s11, %s699
        %p701 = scmp.lt.s32.totalorder %s36, 1
        %s702 = scalar_select %p701, %s36, 1
        %s703 = scalar_lea.vmem %s12, %s702
        %p705 = scmp.eq.s32.totalorder %s36, 0
        // Predicated region
        $region85: #{vit_forward.3} parent=83 // pred_check
          %p706 = pneg %p705
        $region86: #{vit_forward.3} parent=83 // pred_check_branch
          %708 = sbr.rel (%p706) target = $region88
        $region87: #{vit_forward.3} parent=83 // pred_region
          %s709 = smul.u32 %s35, 17
          $region89: #{vit_forward.3} parent=87
            #allocation6 [shape = 's32[1]{0}', space=sflag, size = 0x4, scoped, tag = 'scoped memory for vit_forward.3']
            %s710 = scalar_lea.vmem %s0, %s709
            // Predicated region
            $region90: #{vit_forward.3} parent=89 // pred_check
              _
            $region91: #{vit_forward.3} parent=89 // pred_check_branch
              %712 = sbr.rel (0) target = $region93
            $region92: #{vit_forward.3} parent=89 // pred_region
              %s713 = scalar_lea.vmem %s710, 16
              %s714 = scalar_lea.vmem [#allocation2], 16
              loop: start=0, step=1, limit=1
              $region94: #{vit_forward.3} parent=92 // loop_pre_header
                _
              $region95: #{vit_forward.3} parent=92 // loop_header
                %s716 = sphi 0, %s720
                %p717 = scmp.ge.s32.totalorder %s716, 1
                %s721 = sphi %s710, %s710
                %s722 = sphi [#allocation2], [#allocation2]
              $region96: #{vit_forward.3} parent=92 // loop_header_branch
                %719 = sbr.rel (%p717) target = $region100
              $region97: #{vit_forward.3} parent=92 // loop_body
                %v723 = vld [vmem:[%s721] sm:$0xff]
                %724 = vst [vmem:[%s722] sm:$0xff] %v723
                %v725 = vld [vmem:[%s721 + $0x8] sm:$0xff]
                %726 = vst [vmem:[%s722 + $0x8] sm:$0xff] %v725
              $region98: #{vit_forward.3} parent=92 // loop_footer
                %s720 = sadd.s32 1, %s716
              $region99: #{vit_forward.3} parent=92 // loop_footer_branch
                %715 = sbr.rel target = $region95
              $region100: #{vit_forward.3} parent=92 // loop_exit
                _
              %s728 = ssub.s32 2, 1
              loop: start=0, step=1, limit=1
              $region101: #{vit_forward.3} parent=92 // loop_pre_header
                _
              $region102: #{vit_forward.3} parent=92 // loop_header
                %s730 = sphi 0, %s734
                %p731 = scmp.ge.s32.totalorder %s730, 1
                %s735 = sphi %s713, %s713
                %s736 = sphi %s714, %s714
              $region103: #{vit_forward.3} parent=92 // loop_header_branch
                %733 = sbr.rel (%p731) target = $region107
              $region104: #{vit_forward.3} parent=92 // loop_body
                %v737 = vld [vmem:[%s735] sm:%s728]
                %738 = vst [vmem:[%s736] sm:%s728] %v737
              $region105: #{vit_forward.3} parent=92 // loop_footer
                %s734 = sadd.s32 1, %s730
              $region106: #{vit_forward.3} parent=92 // loop_footer_branch
                %729 = sbr.rel target = $region102
              $region107: #{vit_forward.3} parent=92 // loop_exit
                _
            $region93: #{vit_forward.3} parent=89 // pred_fallthru
              _
            // Predicated region
            $region108: #{vit_forward.3} parent=89 // pred_check
              _
            $region109: #{vit_forward.3} parent=89 // pred_check_branch
              %741 = sbr.rel (0) target = $region111
            $region110: #{vit_forward.3} parent=89 // pred_region
              %742 = vsyncadd [#allocation6], 272
            $region111: #{vit_forward.3} parent=89 // pred_fallthru
              _
            %s743 = smul.u32 17, 1
            %s744 = sshll.u32 %s743, 4
            %745 = dma.done [#allocation6], %s744
        $region88: #{vit_forward.3} parent=83 // pred_fallthru
          _
        %v746 = vld [vmem:[#allocation2] sm:$0xff]
        %v747 = vld [vmem:[#allocation2 + $0x8] sm:$0xff]
        %v748 = vld [vmem:[#allocation2 + $0x10] sm:$0x1]
        %v749 = vpack.c.bf16 %v747, %v746
        %v750 = vpack.c.bf16 %v748, %v748
        %v751 = vld [vmem:[%s664] sm:$0xf]
        %v752 = vld [vmem:[%s664 + $0x4] sm:$0xf]
        %v753 = vld [vmem:[%s664 + $0x8] sm:$0xf]
        %v754 = vld [vmem:[%s664 + $0xc] sm:$0xf]
        %v755 = vld [vmem:[%s667] sm:$0x1]
        %v757 = vperm.slane %v755, 0
        %v763 = vunpack.c.l.b16 %v751
        %v764 = vunpack.c.l.b16 %v752
        %v765 = vunpack.c.l.b16 %v753
        %v766 = vunpack.c.l.b16 %v754
        %v767 = vpack.c.b16 %v764, %v763
        %v768 = vpack.c.b16 %v766, %v765
        %vm771 = vcmask 261120
        %v773 = vsel %vm771, %v749, 0
        %v776 = vsel %vm771, %v750, 0
        %778 = vmatpush.bf16.msra.mxu0 0
        %779 = vmatpush.bf16.msra.mxu0 0
        %780 = vmatpush.bf16.msra.mxu0 0
        %781 = vmatpush.bf16.msra.mxu0 0
        %782 = vmatpush.bf16.msra.mxu0 0
        %783 = vmatpush.bf16.msra.mxu0 0
        %784 = vmatpush.bf16.msra.mxu0 %v768
        %785 = vmatpush.bf16.msra.mxu0 %v767
        %786 = vmatmul.bf16.gmra.mxu0 %v773
        %v787 = vpop.f32.mrf.mxu0
        %v788 = vadd.f32 %v757, %v787
        %v789 = vpop.f32.mrf.mxu0
        %v790 = vadd.f32 %v757, %v789
        %791 = vmatmul.bf16.gmra.mxu0 %v776
        %v792 = vpop.f32.mrf.mxu0
        %v793 = vadd.f32 %v757, %v792
        %v794 = vpop.f32.mrf.mxu0
        %795 = vdwg.mxu0
        %v796 = vpack.c.bf16 %v788, %v788
        %v797 = vpack.c.bf16 %v790, %v790
        %v798 = vpack.c.bf16 %v793, %v793
        %v802 = vunpack.c.l.b16 %v796
        %v803 = vunpack.c.l.b16 %v797
        %v804 = vunpack.c.l.b16 %v798
        %v805 = vpack.c.b16 %v803, %v802
        %v806 = vpack.c.b16 %v804, %v804
        %807 = vrot.lane.b32.xlu0 %v805, 96
        %v808 = vpop.permute.xlu0 %807
        %809 = vrot.lane.b32.xlu0 %v806, 96
        %v810 = vpop.permute.xlu0 %809
        %vm811 = vcmask 64512
        %v813 = vsel %vm811, %v805, 0
        %v816 = vsel %vm811, %v806, 0
        %v819 = vsel %vm811, %v808, 0
        %v822 = vsel %vm811, %v810, 0
        %824 = vmatpush.bf16.xpose.msra.mxu0 0
        %825 = vmatpush.bf16.xpose.msra.mxu0 0
        %826 = vmatpush.bf16.xpose.msra.mxu0 0
        %827 = vmatpush.bf16.xpose.msra.mxu0 0
        %828 = vmatpush.bf16.xpose.msra.mxu0 0
        %829 = vmatpush.bf16.xpose.msra.mxu0 0
        %830 = vmatpush.bf16.xpose.msra.mxu0 %v822
        %831 = vmatpush.bf16.xpose.msra.mxu0 %v819
        %832 = vmatmul.bf16.gmra.mxu0 %v813
        %v833 = vpop.f32.mrf.mxu0
        %v834 = vadd.f32 0.0, %v833
        %v835 = vpop.f32.mrf.mxu0
        %v836 = vadd.f32 0.0, %v835
        %837 = vmatmul.bf16.gmra.mxu0 %v816
        %v838 = vpop.f32.mrf.mxu0
        %v839 = vadd.f32 0.0, %v838
        %v840 = vpop.f32.mrf.mxu0
        %841 = vdwg.mxu0
        %v842 = vmul.f32 %v834, 0.35355338
        %v843 = vmul.f32 %v836, 0.35355338
        %v844 = vmul.f32 %v839, 0.35355338
        %vm845 = vcmask 138240
        %v846 = vsel %vm845, %v842, -inf
        %847 = vmax.xlane.f32.xlu0 %v846
        %v848 = vpop.xlane.xlu0 %847
        %v849 = vsel %vm845, %v843, -inf
        %850 = vmax.xlane.f32.xlu0 %v849
        %v851 = vpop.xlane.xlu0 %850
        %vm852 = vcmask 131072
        %v853 = vsel %vm852, %v844, -inf
        %854 = vmax.xlane.f32.xlu0 %v853
        %v855 = vpop.xlane.xlu0 %854
        %v856 = vsub.f32 %v842, %v848
        %v857 = vsub.f32 %v843, %v851
        %v858 = vsub.f32 %v844, %v855
        %v859 = vmul.f32 %v856, 1.442695
        %v860 = vpow.pop %v859
        %v861 = vmul.f32 %v857, 1.442695
        %v862 = vpow.pop %v861
        %v863 = vmul.f32 %v858, 1.442695
        %v864 = vpow.pop %v863
        %v865 = vsel %vm845, %v860, 0.0
        %866 = vadd.xlane.f32.xlu0 %v865
        %v867 = vpop.xlane.xlu0 %866
        %v868 = vsel %vm845, %v862, 0.0
        %869 = vadd.xlane.f32.xlu0 %v868
        %v870 = vpop.xlane.xlu0 %869
        %v871 = vsel %vm852, %v864, 0.0
        %872 = vadd.xlane.f32.xlu0 %v871
        %v873 = vpop.xlane.xlu0 %872
        %v874 = vrcp.pop %v867
        %v875 = vrcp.pop %v870
        %v876 = vrcp.pop %v873
        %v877 = vmul.f32 %v860, %v874
        %v878 = vmul.f32 %v862, %v875
        %v879 = vmul.f32 %v864, %v876
        %v880 = vpack.c.bf16 %v878, %v877
        %v881 = vpack.c.bf16 %v879, %v879
        %882 = vrot.lane.b32.xlu0 %v805, 64
        %v883 = vpop.permute.xlu0 %882
        %884 = vrot.lane.b32.xlu0 %v806, 64
        %v885 = vpop.permute.xlu0 %884
        %v888 = vsel %vm845, %v880, 0
        %v891 = vsel %vm845, %v881, 0
        %vm893 = vcmask 1040384
        %v894 = vsel 0, 4294967295, 65535
        %v895 = vsel %vm893, %v894, 0
        %v897 = vand.u32 %v885, %v895
        %899 = vmatpush.bf16.msra.mxu0 0
        %900 = vmatpush.bf16.msra.mxu0 0
        %901 = vmatpush.bf16.msra.mxu0 0
        %902 = vmatpush.bf16.msra.mxu0 0
        %903 = vmatpush.bf16.msra.mxu0 0
        %904 = vmatpush.bf16.msra.mxu0 0
        %905 = vmatpush.bf16.msra.mxu0 %v897
        %906 = vmatpush.bf16.msra.mxu0 %v883
        %907 = vmatmul.bf16.gmra.mxu0 %v888
        %v908 = vpop.f32.mrf.mxu0
        %v909 = vadd.f32 0.0, %v908
        %v910 = vpop.f32.mrf.mxu0
        %v911 = vadd.f32 0.0, %v910
        %912 = vmatmul.bf16.gmra.mxu0 %v891
        %v913 = vpop.f32.mrf.mxu0
        %v914 = vadd.f32 0.0, %v913
        %v915 = vpop.f32.mrf.mxu0
        %916 = vdwg.mxu0
        %v917 = vpack.c.bf16 %v909, %v909
        %v918 = vpack.c.bf16 %v911, %v911
        %v919 = vpack.c.bf16 %v914, %v914
        %vm920 = vcmask 60416
        %921 = vst.msk [vmem:[#allocation3] sm:$0xf] %vm920, %v917
        %922 = vst.msk [vmem:[#allocation3 + $0x4] sm:$0xf] %vm920, %v918
        %vm923 = vcmask 57344
        %vm924 = vsmask.f32 256
        %vm925 = vmand %vm923, %vm924
        %v926 = vld [vmem:[#allocation3 + $0x8] sm:$0x1]
        %v927 = vsel %vm925, %v919, %v926
        %928 = vst [vmem:[#allocation3 + $0x8] sm:$0x1] %v927
        %929 = vrot.lane.b32.xlu0 %v805, 120
        %v930 = vpop.permute.xlu0 %929
        %931 = vrot.lane.b32.xlu0 %v806, 120
        %v932 = vpop.permute.xlu0 %931
        %933 = vrot.lane.b32.xlu0 %v805, 88
        %v934 = vpop.permute.xlu0 %933
        %935 = vrot.lane.b32.xlu0 %v806, 88
        %v936 = vpop.permute.xlu0 %935
        %v938 = vsel %vm811, %v930, 0
        %v941 = vsel %vm811, %v932, 0
        %v944 = vsel %vm811, %v934, 0
        %v947 = vsel %vm811, %v936, 0
        %949 = vmatpush.bf16.xpose.msra.mxu0 0
        %950 = vmatpush.bf16.xpose.msra.mxu0 0
        %951 = vmatpush.bf16.xpose.msra.mxu0 0
        %952 = vmatpush.bf16.xpose.msra.mxu0 0
        %953 = vmatpush.bf16.xpose.msra.mxu0 0
        %954 = vmatpush.bf16.xpose.msra.mxu0 0
        %955 = vmatpush.bf16.xpose.msra.mxu0 %v947
        %956 = vmatpush.bf16.xpose.msra.mxu0 %v944
        %957 = vmatmul.bf16.gmra.mxu0 %v938
        %v958 = vpop.f32.mrf.mxu0
        %v959 = vadd.f32 0.0, %v958
        %v960 = vpop.f32.mrf.mxu0
        %v961 = vadd.f32 0.0, %v960
        %962 = vmatmul.bf16.gmra.mxu0 %v941
        %v963 = vpop.f32.mrf.mxu0
        %v964 = vadd.f32 0.0, %v963
        %v965 = vpop.f32.mrf.mxu0
        %966 = vdwg.mxu0
        %v967 = vmul.f32 %v959, 0.35355338
        %v968 = vmul.f32 %v961, 0.35355338
        %v969 = vmul.f32 %v964, 0.35355338
        %v970 = vsel %vm845, %v967, -inf
        %971 = vmax.xlane.f32.xlu0 %v970
        %v972 = vpop.xlane.xlu0 %971
        %v973 = vsel %vm845, %v968, -inf
        %974 = vmax.xlane.f32.xlu0 %v973
        %v975 = vpop.xlane.xlu0 %974
        %v976 = vsel %vm852, %v969, -inf
        %977 = vmax.xlane.f32.xlu0 %v976
        %v978 = vpop.xlane.xlu0 %977
        %v979 = vsub.f32 %v967, %v972
        %v980 = vsub.f32 %v968, %v975
        %v981 = vsub.f32 %v969, %v978
        %v982 = vmul.f32 %v979, 1.442695
        %v983 = vpow.pop %v982
        %v984 = vmul.f32 %v980, 1.442695
        %v985 = vpow.pop %v984
        %v986 = vmul.f32 %v981, 1.442695
        %v987 = vpow.pop %v986
        %v988 = vsel %vm845, %v983, 0.0
        %989 = vadd.xlane.f32.xlu0 %v988
        %v990 = vpop.xlane.xlu0 %989
        %v991 = vsel %vm845, %v985, 0.0
        %992 = vadd.xlane.f32.xlu0 %v991
        %v993 = vpop.xlane.xlu0 %992
        %v994 = vsel %vm852, %v987, 0.0
        %995 = vadd.xlane.f32.xlu0 %v994
        %v996 = vpop.xlane.xlu0 %995
        %v997 = vrcp.pop %v990
        %v998 = vrcp.pop %v993
        %v999 = vrcp.pop %v996
        %v1000 = vmul.f32 %v983, %v997
        %v1001 = vmul.f32 %v985, %v998
        %v1002 = vmul.f32 %v987, %v999
        %v1003 = vpack.c.bf16 %v1001, %v1000
        %v1004 = vpack.c.bf16 %v1002, %v1002
        %1005 = vrot.lane.b32.xlu0 %v805, 56
        %v1006 = vpop.permute.xlu0 %1005
        %1007 = vrot.lane.b32.xlu0 %v806, 56
        %v1008 = vpop.permute.xlu0 %1007
        %v1011 = vsel %vm845, %v1003, 0
        %v1014 = vsel %vm845, %v1004, 0
        %v1017 = vand.u32 %v1008, %v895
        %1019 = vmatpush.bf16.msra.mxu0 0
        %1020 = vmatpush.bf16.msra.mxu0 0
        %1021 = vmatpush.bf16.msra.mxu0 0
        %1022 = vmatpush.bf16.msra.mxu0 0
        %1023 = vmatpush.bf16.msra.mxu0 0
        %1024 = vmatpush.bf16.msra.mxu0 0
        %1025 = vmatpush.bf16.msra.mxu0 %v1017
        %1026 = vmatpush.bf16.msra.mxu0 %v1006
        %1027 = vmatmul.bf16.gmra.mxu0 %v1011
        %v1028 = vpop.f32.mrf.mxu0
        %v1029 = vadd.f32 0.0, %v1028
        %v1030 = vpop.f32.mrf.mxu0
        %v1031 = vadd.f32 0.0, %v1030
        %1032 = vmatmul.bf16.gmra.mxu0 %v1014
        %v1033 = vpop.f32.mrf.mxu0
        %v1034 = vadd.f32 0.0, %v1033
        %v1035 = vpop.f32.mrf.mxu0
        %1036 = vdwg.mxu0
        %v1037 = vpack.c.bf16 %v1029, %v1029
        %v1038 = vpack.c.bf16 %v1031, %v1031
        %v1039 = vpack.c.bf16 %v1034, %v1034
        %1043 = vrot.lane.b32.xlu0 %v1037, 8
        %v1044 = vpop.permute.xlu0 %1043
        %1045 = vrot.lane.b32.xlu0 %v1038, 8
        %v1046 = vpop.permute.xlu0 %1045
        %1047 = vrot.lane.b32.xlu0 %v1039, 8
        %v1048 = vpop.permute.xlu0 %1047
        %vm1052 = vcmask 126016
        %1053 = vst.msk [vmem:[#allocation3] sm:$0xf] %vm1052, %v1044
        %1054 = vst.msk [vmem:[#allocation3 + $0x4] sm:$0xf] %vm1052, %v1046
        %vm1055 = vcmask 122944
        %vm1056 = vmand %vm1055, %vm924
        %v1057 = vld [vmem:[#allocation3 + $0x8] sm:$0x1]
        %v1058 = vsel %vm1056, %v1048, %v1057
        %1059 = vst [vmem:[#allocation3 + $0x8] sm:$0x1] %v1058
        %1060 = vrot.lane.b32.xlu0 %v805, 112
        %v1061 = vpop.permute.xlu0 %1060
        %1062 = vrot.lane.b32.xlu0 %v806, 112
        %v1063 = vpop.permute.xlu0 %1062
        %1064 = vrot.lane.b32.xlu0 %v805, 80
        %v1065 = vpop.permute.xlu0 %1064
        %1066 = vrot.lane.b32.xlu0 %v806, 80
        %v1067 = vpop.permute.xlu0 %1066
        %v1069 = vsel %vm811, %v1061, 0
        %v1072 = vsel %vm811, %v1063, 0
        %v1075 = vsel %vm811, %v1065, 0
        %v1078 = vsel %vm811, %v1067, 0
        %1080 = vmatpush.bf16.xpose.msra.mxu0 0
        %1081 = vmatpush.bf16.xpose.msra.mxu0 0
        %1082 = vmatpush.bf16.xpose.msra.mxu0 0
        %1083 = vmatpush.bf16.xpose.msra.mxu0 0
        %1084 = vmatpush.bf16.xpose.msra.mxu0 0
        %1085 = vmatpush.bf16.xpose.msra.mxu0 0
        %1086 = vmatpush.bf16.xpose.msra.mxu0 %v1078
        %1087 = vmatpush.bf16.xpose.msra.mxu0 %v1075
        %1088 = vmatmul.bf16.gmra.mxu0 %v1069
        %v1089 = vpop.f32.mrf.mxu0
        %v1090 = vadd.f32 0.0, %v1089
        %v1091 = vpop.f32.mrf.mxu0
        %v1092 = vadd.f32 0.0, %v1091
        %1093 = vmatmul.bf16.gmra.mxu0 %v1072
        %v1094 = vpop.f32.mrf.mxu0
        %v1095 = vadd.f32 0.0, %v1094
        %v1096 = vpop.f32.mrf.mxu0
        %1097 = vdwg.mxu0
        %v1098 = vmul.f32 %v1090, 0.35355338
        %v1099 = vmul.f32 %v1092, 0.35355338
        %v1100 = vmul.f32 %v1095, 0.35355338
        %v1101 = vsel %vm845, %v1098, -inf
        %1102 = vmax.xlane.f32.xlu0 %v1101
        %v1103 = vpop.xlane.xlu0 %1102
        %v1104 = vsel %vm845, %v1099, -inf
        %1105 = vmax.xlane.f32.xlu0 %v1104
        %v1106 = vpop.xlane.xlu0 %1105
        %v1107 = vsel %vm852, %v1100, -inf
        %1108 = vmax.xlane.f32.xlu0 %v1107
        %v1109 = vpop.xlane.xlu0 %1108
        %v1110 = vsub.f32 %v1098, %v1103
        %v1111 = vsub.f32 %v1099, %v1106
        %v1112 = vsub.f32 %v1100, %v1109
        %v1113 = vmul.f32 %v1110, 1.442695
        %v1114 = vpow.pop %v1113
        %v1115 = vmul.f32 %v1111, 1.442695
        %v1116 = vpow.pop %v1115
        %v1117 = vmul.f32 %v1112, 1.442695
        %v1118 = vpow.pop %v1117
        %v1119 = vsel %vm845, %v1114, 0.0
        %1120 = vadd.xlane.f32.xlu0 %v1119
        %v1121 = vpop.xlane.xlu0 %1120
        %v1122 = vsel %vm845, %v1116, 0.0
        %1123 = vadd.xlane.f32.xlu0 %v1122
        %v1124 = vpop.xlane.xlu0 %1123
        %v1125 = vsel %vm852, %v1118, 0.0
        %1126 = vadd.xlane.f32.xlu0 %v1125
        %v1127 = vpop.xlane.xlu0 %1126
        %v1128 = vrcp.pop %v1121
        %v1129 = vrcp.pop %v1124
        %v1130 = vrcp.pop %v1127
        %v1131 = vmul.f32 %v1114, %v1128
        %v1132 = vmul.f32 %v1116, %v1129
        %v1133 = vmul.f32 %v1118, %v1130
        %v1134 = vpack.c.bf16 %v1132, %v1131
        %v1135 = vpack.c.bf16 %v1133, %v1133
        %1136 = vrot.lane.b32.xlu0 %v805, 48
        %v1137 = vpop.permute.xlu0 %1136
        %1138 = vrot.lane.b32.xlu0 %v806, 48
        %v1139 = vpop.permute.xlu0 %1138
        %v1142 = vsel %vm845, %v1134, 0
        %v1145 = vsel %vm845, %v1135, 0
        %v1148 = vand.u32 %v1139, %v895
        %1150 = vmatpush.bf16.msra.mxu0 0
        %1151 = vmatpush.bf16.msra.mxu0 0
        %1152 = vmatpush.bf16.msra.mxu0 0
        %1153 = vmatpush.bf16.msra.mxu0 0
        %1154 = vmatpush.bf16.msra.mxu0 0
        %1155 = vmatpush.bf16.msra.mxu0 0
        %1156 = vmatpush.bf16.msra.mxu0 %v1148
        %1157 = vmatpush.bf16.msra.mxu0 %v1137
        %1158 = vmatmul.bf16.gmra.mxu0 %v1142
        %v1159 = vpop.f32.mrf.mxu0
        %v1160 = vadd.f32 0.0, %v1159
        %v1161 = vpop.f32.mrf.mxu0
        %v1162 = vadd.f32 0.0, %v1161
        %1163 = vmatmul.bf16.gmra.mxu0 %v1145
        %v1164 = vpop.f32.mrf.mxu0
        %v1165 = vadd.f32 0.0, %v1164
        %v1166 = vpop.f32.mrf.mxu0
        %1167 = vdwg.mxu0
        %v1168 = vpack.c.bf16 %v1160, %v1160
        %v1169 = vpack.c.bf16 %v1162, %v1162
        %v1170 = vpack.c.bf16 %v1165, %v1165
        %1174 = vrot.lane.b32.xlu0 %v1168, 16
        %v1175 = vpop.permute.xlu0 %1174
        %1176 = vrot.lane.b32.xlu0 %v1169, 16
        %v1177 = vpop.permute.xlu0 %1176
        %1178 = vrot.lane.b32.xlu0 %v1170, 16
        %v1179 = vpop.permute.xlu0 %1178
        %vm1183 = vcmask 191616
        %1184 = vst.msk [vmem:[#allocation3] sm:$0xf] %vm1183, %v1175
        %1185 = vst.msk [vmem:[#allocation3 + $0x4] sm:$0xf] %vm1183, %v1177
        %vm1186 = vcmask 188544
        %vm1187 = vmand %vm1186, %vm924
        %v1188 = vld [vmem:[#allocation3 + $0x8] sm:$0x1]
        %v1189 = vsel %vm1187, %v1179, %v1188
        %1190 = vst [vmem:[#allocation3 + $0x8] sm:$0x1] %v1189
        %1191 = vrot.lane.b32.xlu0 %v805, 104
        %v1192 = vpop.permute.xlu0 %1191
        %1193 = vrot.lane.b32.xlu0 %v806, 104
        %v1194 = vpop.permute.xlu0 %1193
        %1195 = vrot.lane.b32.xlu0 %v805, 72
        %v1196 = vpop.permute.xlu0 %1195
        %1197 = vrot.lane.b32.xlu0 %v806, 72
        %v1198 = vpop.permute.xlu0 %1197
        %v1200 = vsel %vm811, %v1192, 0
        %v1203 = vsel %vm811, %v1194, 0
        %v1206 = vsel %vm811, %v1196, 0
        %v1209 = vsel %vm811, %v1198, 0
        %1211 = vmatpush.bf16.xpose.msra.mxu0 0
        %1212 = vmatpush.bf16.xpose.msra.mxu0 0
        %1213 = vmatpush.bf16.xpose.msra.mxu0 0
        %1214 = vmatpush.bf16.xpose.msra.mxu0 0
        %1215 = vmatpush.bf16.xpose.msra.mxu0 0
        %1216 = vmatpush.bf16.xpose.msra.mxu0 0
        %1217 = vmatpush.bf16.xpose.msra.mxu0 %v1209
        %1218 = vmatpush.bf16.xpose.msra.mxu0 %v1206
        %1219 = vmatmul.bf16.gmra.mxu0 %v1200
        %v1220 = vpop.f32.mrf.mxu0
        %v1221 = vadd.f32 0.0, %v1220
        %v1222 = vpop.f32.mrf.mxu0
        %v1223 = vadd.f32 0.0, %v1222
        %1224 = vmatmul.bf16.gmra.mxu0 %v1203
        %v1225 = vpop.f32.mrf.mxu0
        %v1226 = vadd.f32 0.0, %v1225
        %v1227 = vpop.f32.mrf.mxu0
        %1228 = vdwg.mxu0
        %v1229 = vmul.f32 %v1221, 0.35355338
        %v1230 = vmul.f32 %v1223, 0.35355338
        %v1231 = vmul.f32 %v1226, 0.35355338
        %v1232 = vsel %vm845, %v1229, -inf
        %1233 = vmax.xlane.f32.xlu0 %v1232
        %v1234 = vpop.xlane.xlu0 %1233
        %v1235 = vsel %vm845, %v1230, -inf
        %1236 = vmax.xlane.f32.xlu0 %v1235
        %v1237 = vpop.xlane.xlu0 %1236
        %v1238 = vsel %vm852, %v1231, -inf
        %1239 = vmax.xlane.f32.xlu0 %v1238
        %v1240 = vpop.xlane.xlu0 %1239
        %v1241 = vsub.f32 %v1229, %v1234
        %v1242 = vsub.f32 %v1230, %v1237
        %v1243 = vsub.f32 %v1231, %v1240
        %v1244 = vmul.f32 %v1241, 1.442695
        %v1245 = vpow.pop %v1244
        %v1246 = vmul.f32 %v1242, 1.442695
        %v1247 = vpow.pop %v1246
        %v1248 = vmul.f32 %v1243, 1.442695
        %v1249 = vpow.pop %v1248
        %v1250 = vsel %vm845, %v1245, 0.0
        %1251 = vadd.xlane.f32.xlu0 %v1250
        %v1252 = vpop.xlane.xlu0 %1251
        %v1253 = vsel %vm845, %v1247, 0.0
        %1254 = vadd.xlane.f32.xlu0 %v1253
        %v1255 = vpop.xlane.xlu0 %1254
        %v1256 = vsel %vm852, %v1249, 0.0
        %1257 = vadd.xlane.f32.xlu0 %v1256
        %v1258 = vpop.xlane.xlu0 %1257
        %v1259 = vrcp.pop %v1252
        %v1260 = vrcp.pop %v1255
        %v1261 = vrcp.pop %v1258
        %v1262 = vmul.f32 %v1245, %v1259
        %v1263 = vmul.f32 %v1247, %v1260
        %v1264 = vmul.f32 %v1249, %v1261
        %v1265 = vpack.c.bf16 %v1263, %v1262
        %v1266 = vpack.c.bf16 %v1264, %v1264
        %1267 = vrot.lane.b32.xlu0 %v805, 40
        %v1268 = vpop.permute.xlu0 %1267
        %1269 = vrot.lane.b32.xlu0 %v806, 40
        %v1270 = vpop.permute.xlu0 %1269
        %v1273 = vsel %vm845, %v1265, 0
        %v1276 = vsel %vm845, %v1266, 0
        %v1279 = vand.u32 %v1270, %v895
        %1281 = vmatpush.bf16.msra.mxu0 0
        %1282 = vmatpush.bf16.msra.mxu0 0
        %1283 = vmatpush.bf16.msra.mxu0 0
        %1284 = vmatpush.bf16.msra.mxu0 0
        %1285 = vmatpush.bf16.msra.mxu0 0
        %1286 = vmatpush.bf16.msra.mxu0 0
        %1287 = vmatpush.bf16.msra.mxu0 %v1279
        %1288 = vmatpush.bf16.msra.mxu0 %v1268
        %1289 = vmatmul.bf16.gmra.mxu0 %v1273
        %v1290 = vpop.f32.mrf.mxu0
        %v1291 = vadd.f32 0.0, %v1290
        %v1292 = vpop.f32.mrf.mxu0
        %v1293 = vadd.f32 0.0, %v1292
        %1294 = vmatmul.bf16.gmra.mxu0 %v1276
        %v1295 = vpop.f32.mrf.mxu0
        %v1296 = vadd.f32 0.0, %v1295
        %v1297 = vpop.f32.mrf.mxu0
        %1298 = vdwg.mxu0
        %v1299 = vpack.c.bf16 %v1291, %v1291
        %v1300 = vpack.c.bf16 %v1293, %v1293
        %v1301 = vpack.c.bf16 %v1296, %v1296
        %1305 = vrot.lane.b32.xlu0 %v1299, 24
        %v1306 = vpop.permute.xlu0 %1305
        %1307 = vrot.lane.b32.xlu0 %v1300, 24
        %v1308 = vpop.permute.xlu0 %1307
        %1309 = vrot.lane.b32.xlu0 %v1301, 24
        %v1310 = vpop.permute.xlu0 %1309
        %vm1314 = vcmask 257216
        %1315 = vst.msk [vmem:[#allocation3] sm:$0xf] %vm1314, %v1306
        %1316 = vst.msk [vmem:[#allocation3 + $0x4] sm:$0xf] %vm1314, %v1308
        %vm1317 = vcmask 254144
        %vm1318 = vmand %vm1317, %vm924
        %v1319 = vld [vmem:[#allocation3 + $0x8] sm:$0x1]
        %v1320 = vsel %vm1318, %v1310, %v1319
        %1321 = vst [vmem:[#allocation3 + $0x8] sm:$0x1] %v1320
        %v1322 = vld [vmem:[#allocation3] sm:$0xf]
        %v1323 = vld [vmem:[#allocation3 + $0x4] sm:$0xf]
        %v1324 = vld [vmem:[#allocation3 + $0x8] sm:$0x1]
        %v1325 = vld [vmem:[%s672] sm:$0xf]
        %v1326 = vld [vmem:[%s672 + $0x4] sm:$0xf]
        %v1327 = vld [vmem:[%s672 + $0x8] sm:$0xf]
        %v1328 = vld [vmem:[%s672 + $0xc] sm:$0xf]
        %v1329 = vld [vmem:[%s675] sm:$0x1]
        %v1331 = vperm.slane %v1329, 0
        %v1336 = vunpack.c.l.b16 %v1322
        %v1337 = vunpack.c.l.b16 %v1323
        %v1338 = vunpack.c.l.b16 %v1324
        %v1339 = vpack.c.b16 %v1337, %v1336
        %v1340 = vpack.c.b16 %v1338, %v1338
        %v1345 = vunpack.c.l.b16 %v1325
        %v1346 = vunpack.c.l.b16 %v1326
        %v1347 = vunpack.c.l.b16 %v1327
        %v1348 = vunpack.c.l.b16 %v1328
        %v1349 = vpack.c.b16 %v1346, %v1345
        %v1350 = vpack.c.b16 %v1348, %v1347
        %v1354 = vsel %vm771, %v1339, 0
        %v1357 = vsel %vm771, %v1340, 0
        %1359 = vmatpush.bf16.msra.mxu0 0
        %1360 = vmatpush.bf16.msra.mxu0 0
        %1361 = vmatpush.bf16.msra.mxu0 0
        %1362 = vmatpush.bf16.msra.mxu0 0
        %1363 = vmatpush.bf16.msra.mxu0 0
        %1364 = vmatpush.bf16.msra.mxu0 0
        %1365 = vmatpush.bf16.msra.mxu0 %v1350
        %1366 = vmatpush.bf16.msra.mxu0 %v1349
        %1367 = vmatmul.bf16.gmra.mxu0 %v1354
        %v1368 = vpop.f32.mrf.mxu0
        %v1369 = vadd.f32 %v1331, %v1368
        %v1370 = vpop.f32.mrf.mxu0
        %v1371 = vadd.f32 %v1331, %v1370
        %1372 = vmatmul.bf16.gmra.mxu0 %v1357
        %v1373 = vpop.f32.mrf.mxu0
        %v1374 = vadd.f32 %v1331, %v1373
        %v1375 = vpop.f32.mrf.mxu0
        %1376 = vdwg.mxu0
        %v1377 = vadd.f32 %v746, %v1369
        %v1378 = vadd.f32 %v747, %v1371
        %v1379 = vadd.f32 %v748, %v1374
        %v1380 = vld [vmem:[%s678] sm:$0x1]
        %v1381 = vld [vmem:[%s681] sm:$0x1]
        %v1382 = vsel %vm771, %v1377, 0.0
        %1383 = vadd.xlane.f32.xlu0 %v1382
        %v1384 = vpop.xlane.xlu0 %1383
        %v1385 = vsel %vm771, %v1378, 0.0
        %1386 = vadd.xlane.f32.xlu0 %v1385
        %v1387 = vpop.xlane.xlu0 %1386
        %vm1388 = vcmask 253952
        %v1389 = vsel %vm1388, %v1379, 0.0
        %1390 = vadd.xlane.f32.xlu0 %v1389
        %v1391 = vpop.xlane.xlu0 %1390
        %v1392 = vrcp.pop 32.0
        %v1393 = vmul.f32 32.0, %v1392
        %v1394 = vsub.f32 1.0, %v1393
        %v1395 = vmul.f32 %v1392, %v1394
        %v1396 = vadd.f32 %v1392, %v1395
        %vm1397 = vweird.f32 %v1392
        %v1398 = vsel %vm1397, %v1392, %v1396
        %v1399 = vmul.f32 %v1384, %v1398
        %v1400 = vmul.f32 %v1387, %v1398
        %v1401 = vmul.f32 %v1391, %v1398
        %v1402 = vsub.f32 %v1377, %v1399
        %v1403 = vsub.f32 %v1378, %v1400
        %v1404 = vsub.f32 %v1379, %v1401
        %v1405 = vmul.f32 %v1402, %v1402
        %v1406 = vmul.f32 %v1403, %v1403
        %v1407 = vmul.f32 %v1404, %v1404
        %v1408 = vsel %vm771, %v1405, 0.0
        %1409 = vadd.xlane.f32.xlu0 %v1408
        %v1410 = vpop.xlane.xlu0 %1409
        %v1411 = vsel %vm771, %v1406, 0.0
        %1412 = vadd.xlane.f32.xlu0 %v1411
        %v1413 = vpop.xlane.xlu0 %1412
        %v1414 = vsel %vm1388, %v1407, 0.0
        %1415 = vadd.xlane.f32.xlu0 %v1414
        %v1416 = vpop.xlane.xlu0 %1415
        %v1417 = vmul.f32 %v1410, %v1398
        %v1418 = vmul.f32 %v1413, %v1398
        %v1419 = vmul.f32 %v1416, %v1398
        %v1420 = vadd.f32 %v1417, 1e-05
        %v1421 = vadd.f32 %v1418, 1e-05
        %v1422 = vadd.f32 %v1419, 1e-05
        %v1423 = vrsqrt.pop %v1420
        %v1424 = vmul.f32 %v1423, %v1420
        %v1425 = vmul.f32 %v1424, %v1423
        %v1426 = vmul.f32 0.5, %v1425
        %v1427 = vsub.f32 1.5, %v1426
        %v1428 = vmul.f32 %v1423, %v1427
        %vm1429 = vweird.f32 %v1420
        %vm1430 = vweird.f32 %v1423
        %vm1431 = vmor %vm1429, %vm1430
        %v1432 = vsel %vm1431, %v1423, %v1428
        %v1433 = vrsqrt.pop %v1421
        %v1434 = vmul.f32 %v1433, %v1421
        %v1435 = vmul.f32 %v1434, %v1433
        %v1436 = vmul.f32 0.5, %v1435
        %v1437 = vsub.f32 1.5, %v1436
        %v1438 = vmul.f32 %v1433, %v1437
        %vm1439 = vweird.f32 %v1421
        %vm1440 = vweird.f32 %v1433
        %vm1441 = vmor %vm1439, %vm1440
        %v1442 = vsel %vm1441, %v1433, %v1438
        %v1443 = vrsqrt.pop %v1422
        %v1444 = vmul.f32 %v1443, %v1422
        %v1445 = vmul.f32 %v1444, %v1443
        %v1446 = vmul.f32 0.5, %v1445
        %v1447 = vsub.f32 1.5, %v1446
        %v1448 = vmul.f32 %v1443, %v1447
        %vm1449 = vweird.f32 %v1422
        %vm1450 = vweird.f32 %v1443
        %vm1451 = vmor %vm1449, %vm1450
        %v1452 = vsel %vm1451, %v1443, %v1448
        %v1453 = vmul.f32 %v1402, %v1432
        %v1454 = vmul.f32 %v1403, %v1442
        %v1455 = vmul.f32 %v1404, %v1452
        %v1457 = vperm.slane %v1380, 0
        %v1459 = vmul.f32 %v1453, %v1457
        %v1460 = vmul.f32 %v1454, %v1457
        %v1461 = vmul.f32 %v1455, %v1457
        %v1463 = vperm.slane %v1381, 0
        %v1465 = vadd.f32 %v1459, %v1463
        %v1466 = vadd.f32 %v1460, %v1463
        %v1467 = vadd.f32 %v1461, %v1463
        %v1468 = vpack.c.bf16 %v1466, %v1465
        %v1469 = vpack.c.bf16 %v1467, %v1467
        %v1470 = vld [vmem:[%s686] sm:$0xf]
        %v1471 = vld [vmem:[%s686 + $0x4] sm:$0xf]
        %v1472 = vld [vmem:[%s686 + $0x8] sm:$0xf]
        %v1473 = vld [vmem:[%s686 + $0xc] sm:$0xf]
        %v1474 = vld [vmem:[%s689] sm:$0x1]
        %v1476 = vperm.slane %v1474, 0
        %v1482 = vunpack.c.l.b16 %v1470
        %v1483 = vunpack.c.l.b16 %v1471
        %v1484 = vunpack.c.l.b16 %v1472
        %v1485 = vunpack.c.l.b16 %v1473
        %v1486 = vpack.c.b16 %v1483, %v1482
        %v1487 = vpack.c.b16 %v1485, %v1484
        %v1491 = vsel %vm771, %v1468, 0
        %v1494 = vsel %vm771, %v1469, 0
        %1496 = vmatpush.bf16.msra.mxu0 0
        %1497 = vmatpush.bf16.msra.mxu0 0
        %1498 = vmatpush.bf16.msra.mxu0 0
        %1499 = vmatpush.bf16.msra.mxu0 0
        %1500 = vmatpush.bf16.msra.mxu0 0
        %1501 = vmatpush.bf16.msra.mxu0 0
        %1502 = vmatpush.bf16.msra.mxu0 %v1487
        %1503 = vmatpush.bf16.msra.mxu0 %v1486
        %1504 = vmatmul.bf16.gmra.mxu0 %v1491
        %v1505 = vpop.f32.mrf.mxu0
        %v1506 = vadd.f32 %v1476, %v1505
        %v1507 = vpop.f32.mrf.mxu0
        %v1508 = vadd.f32 %v1476, %v1507
        %1509 = vmatmul.bf16.gmra.mxu0 %v1494
        %v1510 = vpop.f32.mrf.mxu0
        %v1511 = vadd.f32 %v1476, %v1510
        %v1512 = vpop.f32.mrf.mxu0
        %1513 = vdwg.mxu0
        %v1514 = vmax.f32 %v1506, 0.0
        %v1515 = vmax.f32 %v1508, 0.0
        %v1516 = vmax.f32 %v1511, 0.0
        %v1517 = vpack.c.bf16 %v1515, %v1514
        %v1518 = vpack.c.bf16 %v1516, %v1516
        %v1519 = vld [vmem:[%s694] sm:$0xf]
        %v1520 = vld [vmem:[%s694 + $0x4] sm:$0xf]
        %v1521 = vld [vmem:[%s694 + $0x8] sm:$0xf]
        %v1522 = vld [vmem:[%s694 + $0xc] sm:$0xf]
        %v1523 = vld [vmem:[%s694 + $0x10] sm:$0xf]
        %v1524 = vld [vmem:[%s694 + $0x14] sm:$0xf]
        %v1525 = vld [vmem:[%s694 + $0x18] sm:$0xf]
        %v1526 = vld [vmem:[%s694 + $0x1c] sm:$0xf]
        %v1527 = vld [vmem:[%s697] sm:$0x1]
        %v1529 = vperm.slane %v1527, 0
        %v1539 = vunpack.c.l.b16 %v1519
        %v1540 = vunpack.c.l.b16 %v1520
        %v1541 = vunpack.c.l.b16 %v1521
        %v1542 = vunpack.c.l.b16 %v1522
        %v1543 = vunpack.c.l.b16 %v1523
        %v1544 = vunpack.c.l.b16 %v1524
        %v1545 = vunpack.c.l.b16 %v1525
        %v1546 = vunpack.c.l.b16 %v1526
        %v1547 = vpack.c.b16 %v1540, %v1539
        %v1548 = vpack.c.b16 %v1542, %v1541
        %v1549 = vpack.c.b16 %v1544, %v1543
        %v1550 = vpack.c.b16 %v1546, %v1545
        %vm1555 = vcmask 523264
        %v1557 = vsel %vm1555, %v1517, 0
        %v1560 = vsel %vm1555, %v1518, 0
        %1562 = vmatpush.bf16.msra.mxu0 0
        %1563 = vmatpush.bf16.msra.mxu0 0
        %1564 = vmatpush.bf16.msra.mxu0 0
        %1565 = vmatpush.bf16.msra.mxu0 0
        %1566 = vmatpush.bf16.msra.mxu0 %v1550
        %1567 = vmatpush.bf16.msra.mxu0 %v1549
        %1568 = vmatpush.bf16.msra.mxu0 %v1548
        %1569 = vmatpush.bf16.msra.mxu0 %v1547
        %1570 = vmatmul.bf16.gmra.mxu0 %v1557
        %v1571 = vpop.f32.mrf.mxu0
        %v1572 = vadd.f32 %v1529, %v1571
        %v1573 = vpop.f32.mrf.mxu0
        %v1574 = vadd.f32 %v1529, %v1573
        %1575 = vmatmul.bf16.gmra.mxu0 %v1560
        %v1576 = vpop.f32.mrf.mxu0
        %v1577 = vadd.f32 %v1529, %v1576
        %v1578 = vpop.f32.mrf.mxu0
        %1579 = vdwg.mxu0
        %v1580 = vadd.f32 %v1465, %v1572
        %v1581 = vadd.f32 %v1466, %v1574
        %v1582 = vadd.f32 %v1467, %v1577
        %v1583 = vld [vmem:[%s700] sm:$0x1]
        %v1584 = vld [vmem:[%s703] sm:$0x1]
        %v1585 = vsel %vm771, %v1580, 0.0
        %1586 = vadd.xlane.f32.xlu0 %v1585
        %v1587 = vpop.xlane.xlu0 %1586
        %v1588 = vsel %vm771, %v1581, 0.0
        %1589 = vadd.xlane.f32.xlu0 %v1588
        %v1590 = vpop.xlane.xlu0 %1589
        %v1591 = vsel %vm1388, %v1582, 0.0
        %1592 = vadd.xlane.f32.xlu0 %v1591
        %v1593 = vpop.xlane.xlu0 %1592
        %v1594 = vmul.f32 %v1587, %v1398
        %v1595 = vmul.f32 %v1590, %v1398
        %v1596 = vmul.f32 %v1593, %v1398
        %v1597 = vsub.f32 %v1580, %v1594
        %v1598 = vsub.f32 %v1581, %v1595
        %v1599 = vsub.f32 %v1582, %v1596
        %v1600 = vmul.f32 %v1597, %v1597
        %v1601 = vmul.f32 %v1598, %v1598
        %v1602 = vmul.f32 %v1599, %v1599
        %v1603 = vsel %vm771, %v1600, 0.0
        %1604 = vadd.xlane.f32.xlu0 %v1603
        %v1605 = vpop.xlane.xlu0 %1604
        %v1606 = vsel %vm771, %v1601, 0.0
        %1607 = vadd.xlane.f32.xlu0 %v1606
        %v1608 = vpop.xlane.xlu0 %1607
        %v1609 = vsel %vm1388, %v1602, 0.0
        %1610 = vadd.xlane.f32.xlu0 %v1609
        %v1611 = vpop.xlane.xlu0 %1610
        %v1612 = vmul.f32 %v1605, %v1398
        %v1613 = vmul.f32 %v1608, %v1398
        %v1614 = vmul.f32 %v1611, %v1398
        %v1615 = vadd.f32 %v1612, 1e-05
        %v1616 = vadd.f32 %v1613, 1e-05
        %v1617 = vadd.f32 %v1614, 1e-05
        %v1618 = vrsqrt.pop %v1615
        %v1619 = vmul.f32 %v1618, %v1615
        %v1620 = vmul.f32 %v1619, %v1618
        %v1621 = vmul.f32 0.5, %v1620
        %v1622 = vsub.f32 1.5, %v1621
        %v1623 = vmul.f32 %v1618, %v1622
        %vm1624 = vweird.f32 %v1615
        %vm1625 = vweird.f32 %v1618
        %vm1626 = vmor %vm1624, %vm1625
        %v1627 = vsel %vm1626, %v1618, %v1623
        %v1628 = vrsqrt.pop %v1616
        %v1629 = vmul.f32 %v1628, %v1616
        %v1630 = vmul.f32 %v1629, %v1628
        %v1631 = vmul.f32 0.5, %v1630
        %v1632 = vsub.f32 1.5, %v1631
        %v1633 = vmul.f32 %v1628, %v1632
        %vm1634 = vweird.f32 %v1616
        %vm1635 = vweird.f32 %v1628
        %vm1636 = vmor %vm1634, %vm1635
        %v1637 = vsel %vm1636, %v1628, %v1633
        %v1638 = vrsqrt.pop %v1617
        %v1639 = vmul.f32 %v1638, %v1617
        %v1640 = vmul.f32 %v1639, %v1638
        %v1641 = vmul.f32 0.5, %v1640
        %v1642 = vsub.f32 1.5, %v1641
        %v1643 = vmul.f32 %v1638, %v1642
        %vm1644 = vweird.f32 %v1617
        %vm1645 = vweird.f32 %v1638
        %vm1646 = vmor %vm1644, %vm1645
        %v1647 = vsel %vm1646, %v1638, %v1643
        %v1648 = vmul.f32 %v1597, %v1627
        %v1649 = vmul.f32 %v1598, %v1637
        %v1650 = vmul.f32 %v1599, %v1647
        %v1652 = vperm.slane %v1583, 0
        %v1654 = vmul.f32 %v1648, %v1652
        %v1655 = vmul.f32 %v1649, %v1652
        %v1656 = vmul.f32 %v1650, %v1652
        %v1658 = vperm.slane %v1584, 0
        %v1660 = vadd.f32 %v1654, %v1658
        %v1661 = vadd.f32 %v1655, %v1658
        %v1662 = vadd.f32 %v1656, %v1658
        %1663 = vst.msk [vmem:[#allocation2] sm:$0xff] %vm771, %v1660
        %1664 = vst.msk [vmem:[#allocation2 + $0x8] sm:$0xff] %vm771, %v1661
        %1665 = vst.msk [vmem:[#allocation2 + $0x10] sm:$0x1] %vm1388, %v1662
        %p1666 = scmp.eq.s32.totalorder %s36, 1
        // Predicated region
        $region112: #{vit_forward.3} parent=83 // pred_check
          %p1667 = pneg %p1666
        $region113: #{vit_forward.3} parent=83 // pred_check_branch
          %1669 = sbr.rel (%p1667) target = $region115
        $region114: #{vit_forward.3} parent=83 // pred_region
          %v1670 = vld [vmem:[%s13] sm:$0x1]
          %v1671 = vld [vmem:[%s14] sm:$0x1]
          %v1672 = vsel %vm1388, %v1660, 0.0
          %1673 = vadd.xlane.f32.xlu0 %v1672
          %v1674 = vpop.xlane.xlu0 %1673
          %v1675 = vmul.f32 %v1674, %v1398
          %v1676 = vsub.f32 %v1660, %v1675
          %v1677 = vmul.f32 %v1676, %v1676
          %v1678 = vsel %vm1388, %v1677, 0.0
          %1679 = vadd.xlane.f32.xlu0 %v1678
          %v1680 = vpop.xlane.xlu0 %1679
          %v1681 = vmul.f32 %v1680, %v1398
          %v1682 = vadd.f32 %v1681, 1e-05
          %v1683 = vrsqrt.pop %v1682
          %v1684 = vmul.f32 %v1683, %v1682
          %v1685 = vmul.f32 %v1684, %v1683
          %v1686 = vmul.f32 0.5, %v1685
          %v1687 = vsub.f32 1.5, %v1686
          %v1688 = vmul.f32 %v1683, %v1687
          %vm1689 = vweird.f32 %v1682
          %vm1690 = vweird.f32 %v1683
          %vm1691 = vmor %vm1689, %vm1690
          %v1692 = vsel %vm1691, %v1683, %v1688
          %v1693 = vmul.f32 %v1676, %v1692
          %v1694 = vmul.f32 %v1693, %v1670
          %v1695 = vadd.f32 %v1694, %v1671
          %v1696 = vpack.c.bf16 %v1695, %v1695
          %v1697 = vld [vmem:[%s15] sm:$0xf]
          %v1698 = vld [vmem:[%s15 + $0x4] sm:$0xf]
          %v1699 = vld [vmem:[%s15 + $0x8] sm:$0xf]
          %v1700 = vld [vmem:[%s15 + $0xc] sm:$0xf]
          %v1701 = vld [vmem:[%s16] sm:$0x1]
          %v1706 = vunpack.c.l.b16 %v1697
          %v1707 = vunpack.c.l.b16 %v1698
          %v1708 = vunpack.c.l.b16 %v1699
          %v1709 = vunpack.c.l.b16 %v1700
          %v1710 = vpack.c.b16 %v1707, %v1706
          %v1711 = vpack.c.b16 %v1709, %v1708
          %v1715 = vsel %vm771, %v1696, 0
          %1717 = vmatpush.bf16.msra.mxu0 0
          %1718 = vmatpush.bf16.msra.mxu0 0
          %1719 = vmatpush.bf16.msra.mxu0 0
          %1720 = vmatpush.bf16.msra.mxu0 0
          %1721 = vmatpush.bf16.msra.mxu0 0
          %1722 = vmatpush.bf16.msra.mxu0 0
          %1723 = vmatpush.bf16.msra.mxu0 %v1711
          %1724 = vmatpush.bf16.msra.mxu0 %v1710
          %1725 = vmatmul.bf16.gmra.mxu0 %v1715
          %v1726 = vpop.f32.mrf.mxu0
          %v1727 = vadd.f32 %v1701, %v1726
          %v1728 = vpop.f32.mrf.mxu0
          %1729 = vdwg.mxu0
          %vm1730 = vcmask 73728
          %1731 = vst.msk [vmem:[%s659] sm:$0x1] %vm1730, %v1727
        $region115: #{vit_forward.3} parent=83 // pred_fallthru
          _
        %s1732 = sand.u32 %s447, 1
        %s1733 = scalar_lea.sflag [#allocation5], %s1732
        %s1734 = sand.u32 %s447, 1
        %s1735 = scalar_lea.vmem [#allocation4], %s1734
        // Predicated region
        $region116: #{vit_forward.3} parent=83 // pred_check
          %p1736 = pneg %p457
        $region117: #{vit_forward.3} parent=83 // pred_check_branch
          %1738 = sbr.rel (%p1736) target = $region119
        $region118: #{vit_forward.3} parent=83 // pred_region
          %1740 = vsyncadd %s1733, 0
          %s1741 = scalar_lea.hbm %s17, %s35
          %s1743 = sshll.u32 %s1735, 4
          %s1744 = int_to_ptr.vmem [resolvable:$true] %s1743
          %s1745 = sshll.u32 %s1741, 4
          %s1746 = int_to_ptr.hbm [resolvable:$true] %s1745
          %1748 = dma.vmem_to_hbm [thread:$0]  %s1744, 16, %s1746, %s1733
        $region119: #{vit_forward.3} parent=83 // pred_fallthru
          _
      $region84: #{vit_forward.3} parent=5 // pred_fallthru
        _
      %p1749 = scmp.le.s32.totalorder 2, %s26
      // Predicated region
      $region120: #{vit_forward.3} parent=5 // pred_check
        %p1750 = pneg %p1749
      $region121: #{vit_forward.3} parent=5 // pred_check_branch
        %1752 = sbr.rel (%p1750) target = $region123
      $region122: #{vit_forward.3} parent=5 // pred_region
        %s1753 = ssub.s32 %s26, 2
        // Predicated region
        $region124: #{vit_forward.3} parent=122 // pred_check
          %p1754 = pneg %p463
        $region125: #{vit_forward.3} parent=122 // pred_check_branch
          %1756 = sbr.rel (%p1754) target = $region127
        $region126: #{vit_forward.3} parent=122 // pred_region
          %s1757 = sand.u32 %s448, 1
          %s1758 = scalar_lea.sflag [#allocation5], %s1757
          %s1759 = sand.u32 %s448, 1
          %s1760 = scalar_lea.vmem [#allocation4], %s1759
          %1762 = dma.done %s1758, 16
        $region127: #{vit_forward.3} parent=122 // pred_fallthru
          _
      $region123: #{vit_forward.3} parent=5 // pred_fallthru
        _
    $region6: #{vit_forward.3} parent=1 // loop_footer
      %s30 = sadd.s32 1, %s26
    $region7: #{vit_forward.3} parent=1 // loop_footer_branch
      %25 = sbr.rel target = $region3
    $region8: #{vit_forward.3} parent=1 // loop_exit
      _
    %1763 = vsyncpa [#allocation5], 1
    %s1764 = scalar_lea.sflag [#allocation5], 1
    %1765 = vsyncpa %s1764, 1

</llo_original>
